<compile_context>
chip_gen: v7x
topology: tpu7x:2x2x1
jax: 0.10.0
libtpu: 0.0.40
codegen_flags: <defaults>
</compile_context>

<pallas_src>
import jax
import jax.numpy as jnp
from jax.experimental import pallas as pl
from jax.experimental.pallas import tpu as pltpu

BN_EPS = 1e-5


# ----------------------------- fused Pallas kernel ------------------------- #

def make_fused_gin_kernel(n_layers, mlp_depth, edge_depth):
    """Build the single fused kernel body.

    Ref order (must mirror flatten_inputs):
      x, agg, g_src, g_dst,
      w_emb, b_emb,
      per GIN layer: mlp linears (w,b)*depth, mlp bns (g,be)*(depth-1),
                     apply_bn (g,be), outer_bn (g,be),
      per prediction head (n_layers+1): (w, b),
      edge MLP: w0_top, w0_bot, b0, remaining linears (w,b)*(edge_depth-1),
                bns (g,be)*(edge_depth-1),
      then the single output ref.
    """

    def kernel(*refs):
        *in_refs, o_ref = refs
        it = iter(in_refs)

        def nxt():
            return next(it)[...]

        def linear(h, w, b):
            return jnp.dot(h, w, preferred_element_type=jnp.float32) + b

        def bn(h, g, be):
            # BatchNorm1d training-mode forward, single-pass biased batch stats.
            # Valid only while the full row dimension is in this one block.
            inv_n = 1.0 / h.shape[0]
            mean = jnp.sum(h, axis=0, keepdims=True) * inv_n
            var = jnp.sum(h * h, axis=0, keepdims=True) * inv_n - mean * mean
            return (h - mean) * jax.lax.rsqrt(var + BN_EPS) * g + be

        def relu(h):
            return jnp.maximum(h, 0.0)

        def mlp(h, depth):
            # MLP.forward: relu(BN(Lin_i(.))) for i < depth-1, then plain Lin_last.
            lins = [(nxt(), nxt()) for _ in range(depth)]
            bns = [(nxt(), nxt()) for _ in range(depth - 1)]
            for (w, b), (g, be) in zip(lins[:-1], bns):
                h = relu(bn(linear(h, w, b), g, be))
            w, b = lins[-1]
            return linear(h, w, b)

        x = nxt()        # [N, F] node features
        agg = nxt()      # [N, N]  I + D_in^-1 A^T  (GINConv 'mean', eps=0)
        g_src = nxt()    # [E, N]  one-hot edge-source selector
        g_dst = nxt()    # [E, N]  one-hot edge-destination selector

        # embedding_h
        h = linear(x, nxt(), nxt())
        hidden_rep = [h]

        # GIN layers -- fully VMEM/register resident between stages.
        for _ in range(n_layers):
            rst = jnp.dot(agg, h, preferred_element_type=jnp.float32)
            t = mlp(rst, mlp_depth)
            t = relu(bn(t, nxt(), nxt()))   # ApplyNodeFunc: BN + ReLU
            h = relu(bn(t, nxt(), nxt()))   # GIN per-layer BN + ReLU (fused)
            hidden_rep.append(h)

        # Prediction head: score = sum_i Lin_pred_i(h_i), accumulated in registers.
        score = None
        for hr in hidden_rep:
            s = linear(hr, nxt(), nxt())
            score = s if score is None else score + s

        # Edge head.  concat([score[src], score[dst]]) @ W0 is rewritten as
        #   score[src] @ W0[:H] + score[dst] @ W0[H:]
        # and the gather is folded into the matmul:
        #   (G_src @ score) @ W_top == G_src @ (score @ W_top)   (cheaper order).
        w0_top, w0_bot, b0 = nxt(), nxt(), nxt()
        proj_top = jnp.dot(score, w0_top, preferred_element_type=jnp.float32)
        proj_bot = jnp.dot(score, w0_bot, preferred_element_type=jnp.float32)
        e = (jnp.dot(g_src, proj_top, preferred_element_type=jnp.float32)
             + jnp.dot(g_dst, proj_bot, preferred_element_type=jnp.float32)
             + b0)
        if edge_depth > 1:
            lins = [(nxt(), nxt()) for _ in range(edge_depth - 1)]
            bns = [(nxt(), nxt()) for _ in range(edge_depth - 1)]
            for (w, b), (g, be) in zip(lins, bns):
                e = linear(relu(bn(e, g, be)), w, b)

        o_ref[...] = e.astype(o_ref.dtype)

    return kernel


def flatten_inputs(params, x, agg, g_src, g_dst):
    """Flatten params into the exact ref order the fused kernel consumes."""

    def vec(v):
        return v.reshape(1, -1)

    flat = [x, agg, g_src, g_dst]

    w, b = params["emb"]
    flat += [w, vec(b)]

    for mlp_p, apply_bn, outer_bn in params["gin_layers"]:
        for (w, b) in mlp_p["linears"]:
            flat += [w, vec(b)]
        for (g, be) in mlp_p["bns"]:
            flat += [vec(g), vec(be)]
        flat += [vec(apply_bn[0]), vec(apply_bn[1])]
        flat += [vec(outer_bn[0]), vec(outer_bn[1])]

    for (w, b) in params["pred"]:
        flat += [w, vec(b)]

    e_lin = params["edge_mlp"]["linears"]
    e_bns = params["edge_mlp"]["bns"]
    w0, b0 = e_lin[0]
    half = w0.shape[0] // 2
    flat += [w0[:half], w0[half:], vec(b0)]        # split first edge weight
    for (w, b) in e_lin[1:]:
        flat += [w, vec(b)]
    for (g, be) in e_bns:
        flat += [vec(g), vec(be)]
    return flat


def gin_edge_simple_forward(params, node_feat, agg_mat, src, dst, n_classes):
    n_layers = len(params["gin_layers"])
    mlp_depth = len(params["gin_layers"][0][0]["linears"]) if n_layers else 1
    edge_depth = len(params["edge_mlp"]["linears"])
    n_nodes = node_feat.shape[0]
    n_edges = src.shape[0]

    # One-hot edge selectors (gather expressed as a matmul inside the kernel).
    g_src = jax.nn.one_hot(src, n_nodes, dtype=jnp.float32)
    g_dst = jax.nn.one_hot(dst, n_nodes, dtype=jnp.float32)

    inputs = flatten_inputs(params, node_feat, agg_mat, g_src, g_dst)
    kernel = make_fused_gin_kernel(n_layers, mlp_depth, edge_depth)

    in_specs = [pl.BlockSpec(a.shape, lambda i: (0, 0)) for a in inputs]
    return pl.pallas_call(
        kernel,
        out_shape=jax.ShapeDtypeStruct((n_edges, n_classes), jnp.float32),
        grid=(1,),
        in_specs=in_specs,
        out_specs=pl.BlockSpec((n_edges, n_classes), lambda i: (0, 0)),
        compiler_params=pltpu.CompilerParams(
            dimension_semantics=("arbitrary",)),
    )(*inputs)


# --------------------------- parameter construction ------------------------ #

def init_linear(key, fan_in, fan_out):
    kw, kb = jax.random.split(key)
    bound = 1.0 / jnp.sqrt(float(fan_in))
    w = jax.random.uniform(kw, (fan_in, fan_out), jnp.float32, -bound, bound)
    b = jax.random.uniform(kb, (fan_out,), jnp.float32, -bound, bound)
    return w, b


def init_bn(key, dim):
    kg, kb = jax.random.split(key)
    gamma = 1.0 + 0.1 * jax.random.normal(kg, (dim,), jnp.float32)
    beta = 0.1 * jax.random.normal(kb, (dim,), jnp.float32)
    return gamma, beta


def init_mlp(key, depth, in_dim, hidden_dim, out_dim):
    """Matches MLP.__init__: depth==1 -> single Linear, else Linear/BN stack."""
    if depth == 1:
        return {"linears": [init_linear(key, in_dim, out_dim)], "bns": []}
    ks = jax.random.split(key, 2 * depth)
    dims = [in_dim] + [hidden_dim] * (depth - 1) + [out_dim]
    linears = [init_linear(ks[i], dims[i], dims[i + 1]) for i in range(depth)]
    bns = [init_bn(ks[depth + i], hidden_dim) for i in range(depth - 1)]
    return {"linears": linears, "bns": bns}


def build_params(key, *, n_layers, depth_of_mlp, in_features, hidden, n_classes):
    keys = iter(jax.random.split(key, 4 + 4 * n_layers + (n_layers + 1)))
    params = {}
    params["emb"] = init_linear(next(keys), in_features, hidden)
    params["gin_layers"] = []
    for _ in range(n_layers):
        mlp = init_mlp(next(keys), depth_of_mlp, hidden, hidden, hidden)
        apply_bn = init_bn(next(keys), hidden)   # ApplyNodeFunc.bn
        outer_bn = init_bn(next(keys), hidden)   # GIN.batch_norms[i]
        params["gin_layers"].append((mlp, apply_bn, outer_bn))
    # inner GIN's n_classes is hidden_features in this configuration
    params["pred"] = [init_linear(next(keys), hidden, hidden)
                      for _ in range(n_layers + 1)]
    params["edge_mlp"] = init_mlp(next(keys), depth_of_mlp, 2 * hidden, hidden,
                                  n_classes)
    return params


# ----------------------------------- main ----------------------------------- #

if __name__ == "__main__":
    N_NODES = 16
    IN_FEATS = 8
    HIDDEN = 32
    N_CLASSES = 8
    N_LAYERS = 2
    DEPTH_MLP = 2

    key = jax.random.PRNGKey(0)
    k_feat, k_param = jax.random.split(key)

    # deterministic graph: bidirectional ring on 16 nodes -> 32 directed edges
    idx = jnp.arange(N_NODES)
    src = jnp.concatenate([idx, (idx + 1) % N_NODES])
    dst = jnp.concatenate([(idx + 1) % N_NODES, idx])

    # dense aggregation matrix for GINConv 'mean': agg = I + D_in^{-1} * A^T
    adj = jnp.zeros((N_NODES, N_NODES), jnp.float32).at[dst, src].add(1.0)
    in_deg = jnp.maximum(adj.sum(axis=1, keepdims=True), 1.0)
    agg_mat = jnp.eye(N_NODES, dtype=jnp.float32) + adj / in_deg

    node_feat = jax.random.normal(k_feat, (N_NODES, IN_FEATS), jnp.float32)

    params = build_params(k_param, n_layers=N_LAYERS, depth_of_mlp=DEPTH_MLP,
                          in_features=IN_FEATS, hidden=HIDDEN,
                          n_classes=N_CLASSES)

    edge_out = gin_edge_simple_forward(params, node_feat, agg_mat, src, dst,
                                       N_CLASSES)
    edge_out = jax.block_until_ready(edge_out)

    assert edge_out.shape == (src.shape[0], N_CLASSES), edge_out.shape
    assert bool(jnp.all(jnp.isfinite(edge_out)))
    print("KERNEL_OK")
</pallas_src>

<mosaic_0001>
module attributes {stable_mosaic.version = 11 : i64} {
  func.func @kernel(%arg0: i32, %arg1: memref<16x8xf32, #tpu.memory_space<vmem>>, %arg2: memref<16x16xf32, #tpu.memory_space<vmem>>, %arg3: memref<32x16xf32, #tpu.memory_space<vmem>>, %arg4: memref<32x16xf32, #tpu.memory_space<vmem>>, %arg5: memref<8x32xf32, #tpu.memory_space<vmem>>, %arg6: memref<1x32xf32, #tpu.memory_space<vmem>>, %arg7: memref<32x32xf32, #tpu.memory_space<vmem>>, %arg8: memref<1x32xf32, #tpu.memory_space<vmem>>, %arg9: memref<32x32xf32, #tpu.memory_space<vmem>>, %arg10: memref<1x32xf32, #tpu.memory_space<vmem>>, %arg11: memref<1x32xf32, #tpu.memory_space<vmem>>, %arg12: memref<1x32xf32, #tpu.memory_space<vmem>>, %arg13: memref<1x32xf32, #tpu.memory_space<vmem>>, %arg14: memref<1x32xf32, #tpu.memory_space<vmem>>, %arg15: memref<1x32xf32, #tpu.memory_space<vmem>>, %arg16: memref<1x32xf32, #tpu.memory_space<vmem>>, %arg17: memref<32x32xf32, #tpu.memory_space<vmem>>, %arg18: memref<1x32xf32, #tpu.memory_space<vmem>>, %arg19: memref<32x32xf32, #tpu.memory_space<vmem>>, %arg20: memref<1x32xf32, #tpu.memory_space<vmem>>, %arg21: memref<1x32xf32, #tpu.memory_space<vmem>>, %arg22: memref<1x32xf32, #tpu.memory_space<vmem>>, %arg23: memref<1x32xf32, #tpu.memory_space<vmem>>, %arg24: memref<1x32xf32, #tpu.memory_space<vmem>>, %arg25: memref<1x32xf32, #tpu.memory_space<vmem>>, %arg26: memref<1x32xf32, #tpu.memory_space<vmem>>, %arg27: memref<32x32xf32, #tpu.memory_space<vmem>>, %arg28: memref<1x32xf32, #tpu.memory_space<vmem>>, %arg29: memref<32x32xf32, #tpu.memory_space<vmem>>, %arg30: memref<1x32xf32, #tpu.memory_space<vmem>>, %arg31: memref<32x32xf32, #tpu.memory_space<vmem>>, %arg32: memref<1x32xf32, #tpu.memory_space<vmem>>, %arg33: memref<32x32xf32, #tpu.memory_space<vmem>>, %arg34: memref<32x32xf32, #tpu.memory_space<vmem>>, %arg35: memref<1x32xf32, #tpu.memory_space<vmem>>, %arg36: memref<32x8xf32, #tpu.memory_space<vmem>>, %arg37: memref<1x8xf32, #tpu.memory_space<vmem>>, %arg38: memref<1x32xf32, #tpu.memory_space<vmem>>, %arg39: memref<1x32xf32, #tpu.memory_space<vmem>>, %arg40: memref<32x8xf32, #tpu.memory_space<vmem>>) attributes {dimension_semantics = [#tpu.dimension_semantics<arbitrary>], iteration_bounds = array<i64: 1>, scalar_prefetch = 0 : i64, scratch_operands = 0 : i64, tpu.core_type = #tpu.core_type<tc>, window_params = [{pipeline_mode = #tpu.pipeline_mode<synchronous>, transform_indices = @transform_0, window_bounds = array<i64: 16, 8>}, {pipeline_mode = #tpu.pipeline_mode<synchronous>, transform_indices = @transform_1, window_bounds = array<i64: 16, 16>}, {pipeline_mode = #tpu.pipeline_mode<synchronous>, transform_indices = @transform_2, window_bounds = array<i64: 32, 16>}, {pipeline_mode = #tpu.pipeline_mode<synchronous>, transform_indices = @transform_3, window_bounds = array<i64: 32, 16>}, {pipeline_mode = #tpu.pipeline_mode<synchronous>, transform_indices = @transform_4, window_bounds = array<i64: 8, 32>}, {pipeline_mode = #tpu.pipeline_mode<synchronous>, transform_indices = @transform_5, window_bounds = array<i64: 1, 32>}, {pipeline_mode = #tpu.pipeline_mode<synchronous>, transform_indices = @transform_6, window_bounds = array<i64: 32, 32>}, {pipeline_mode = #tpu.pipeline_mode<synchronous>, transform_indices = @transform_7, window_bounds = array<i64: 1, 32>}, {pipeline_mode = #tpu.pipeline_mode<synchronous>, transform_indices = @transform_8, window_bounds = array<i64: 32, 32>}, {pipeline_mode = #tpu.pipeline_mode<synchronous>, transform_indices = @transform_9, window_bounds = array<i64: 1, 32>}, {pipeline_mode = #tpu.pipeline_mode<synchronous>, transform_indices = @transform_10, window_bounds = array<i64: 1, 32>}, {pipeline_mode = #tpu.pipeline_mode<synchronous>, transform_indices = @transform_11, window_bounds = array<i64: 1, 32>}, {pipeline_mode = #tpu.pipeline_mode<synchronous>, transform_indices = @transform_12, window_bounds = array<i64: 1, 32>}, {pipeline_mode = #tpu.pipeline_mode<synchronous>, transform_indices = @transform_13, window_bounds = array<i64: 1, 32>}, {pipeline_mode = #tpu.pipeline_mode<synchronous>, transform_indices = @transform_14, window_bounds = array<i64: 1, 32>}, {pipeline_mode = #tpu.pipeline_mode<synchronous>, transform_indices = @transform_15, window_bounds = array<i64: 1, 32>}, {pipeline_mode = #tpu.pipeline_mode<synchronous>, transform_indices = @transform_16, window_bounds = array<i64: 32, 32>}, {pipeline_mode = #tpu.pipeline_mode<synchronous>, transform_indices = @transform_17, window_bounds = array<i64: 1, 32>}, {pipeline_mode = #tpu.pipeline_mode<synchronous>, transform_indices = @transform_18, window_bounds = array<i64: 32, 32>}, {pipeline_mode = #tpu.pipeline_mode<synchronous>, transform_indices = @transform_19, window_bounds = array<i64: 1, 32>}, {pipeline_mode = #tpu.pipeline_mode<synchronous>, transform_indices = @transform_20, window_bounds = array<i64: 1, 32>}, {pipeline_mode = #tpu.pipeline_mode<synchronous>, transform_indices = @transform_21, window_bounds = array<i64: 1, 32>}, {pipeline_mode = #tpu.pipeline_mode<synchronous>, transform_indices = @transform_22, window_bounds = array<i64: 1, 32>}, {pipeline_mode = #tpu.pipeline_mode<synchronous>, transform_indices = @transform_23, window_bounds = array<i64: 1, 32>}, {pipeline_mode = #tpu.pipeline_mode<synchronous>, transform_indices = @transform_24, window_bounds = array<i64: 1, 32>}, {pipeline_mode = #tpu.pipeline_mode<synchronous>, transform_indices = @transform_25, window_bounds = array<i64: 1, 32>}, {pipeline_mode = #tpu.pipeline_mode<synchronous>, transform_indices = @transform_26, window_bounds = array<i64: 32, 32>}, {pipeline_mode = #tpu.pipeline_mode<synchronous>, transform_indices = @transform_27, window_bounds = array<i64: 1, 32>}, {pipeline_mode = #tpu.pipeline_mode<synchronous>, transform_indices = @transform_28, window_bounds = array<i64: 32, 32>}, {pipeline_mode = #tpu.pipeline_mode<synchronous>, transform_indices = @transform_29, window_bounds = array<i64: 1, 32>}, {pipeline_mode = #tpu.pipeline_mode<synchronous>, transform_indices = @transform_30, window_bounds = array<i64: 32, 32>}, {pipeline_mode = #tpu.pipeline_mode<synchronous>, transform_indices = @transform_31, window_bounds = array<i64: 1, 32>}, {pipeline_mode = #tpu.pipeline_mode<synchronous>, transform_indices = @transform_32, window_bounds = array<i64: 32, 32>}, {pipeline_mode = #tpu.pipeline_mode<synchronous>, transform_indices = @transform_33, window_bounds = array<i64: 32, 32>}, {pipeline_mode = #tpu.pipeline_mode<synchronous>, transform_indices = @transform_34, window_bounds = array<i64: 1, 32>}, {pipeline_mode = #tpu.pipeline_mode<synchronous>, transform_indices = @transform_35, window_bounds = array<i64: 32, 8>}, {pipeline_mode = #tpu.pipeline_mode<synchronous>, transform_indices = @transform_36, window_bounds = array<i64: 1, 8>}, {pipeline_mode = #tpu.pipeline_mode<synchronous>, transform_indices = @transform_37, window_bounds = array<i64: 1, 32>}, {pipeline_mode = #tpu.pipeline_mode<synchronous>, transform_indices = @transform_38, window_bounds = array<i64: 1, 32>}, {pipeline_mode = #tpu.pipeline_mode<synchronous>, transform_indices = @transform_39, window_bounds = array<i64: 32, 8>}]} {
    %c0 = arith.constant 0 : index
    %c0_0 = arith.constant 0 : index
    %0 = vector.load %arg1[%c0, %c0_0] : memref<16x8xf32, #tpu.memory_space<vmem>>, vector<16x8xf32>
    %c0_1 = arith.constant 0 : index
    %c0_2 = arith.constant 0 : index
    %1 = vector.load %arg2[%c0_1, %c0_2] : memref<16x16xf32, #tpu.memory_space<vmem>>, vector<16x16xf32>
    %c0_3 = arith.constant 0 : index
    %c0_4 = arith.constant 0 : index
    %2 = vector.load %arg3[%c0_3, %c0_4] : memref<32x16xf32, #tpu.memory_space<vmem>>, vector<32x16xf32>
    %c0_5 = arith.constant 0 : index
    %c0_6 = arith.constant 0 : index
    %3 = vector.load %arg4[%c0_5, %c0_6] : memref<32x16xf32, #tpu.memory_space<vmem>>, vector<32x16xf32>
    %c0_7 = arith.constant 0 : index
    %c0_8 = arith.constant 0 : index
    %4 = vector.load %arg5[%c0_7, %c0_8] : memref<8x32xf32, #tpu.memory_space<vmem>>, vector<8x32xf32>
    %c0_9 = arith.constant 0 : index
    %c0_10 = arith.constant 0 : index
    %5 = vector.load %arg6[%c0_9, %c0_10] : memref<1x32xf32, #tpu.memory_space<vmem>>, vector<1x32xf32>
    %cst = arith.constant dense<0.000000e+00> : vector<16x32xf32>
    %6 = tpu.matmul %0, %4, %cst {dimension_numbers = #tpu.dot_dimension_numbers<[1], [0], [0], [1], [0, 0, 1, 1], [], []>} : vector<16x8xf32>, vector<8x32xf32>, vector<16x32xf32> -> vector<16x32xf32>
    %7 = vector.broadcast %5 : vector<1x32xf32> to vector<16x32xf32>
    %8 = arith.addf %6, %7 : vector<16x32xf32>
    %cst_11 = arith.constant dense<0.000000e+00> : vector<16x32xf32>
    %9 = tpu.matmul %1, %8, %cst_11 {dimension_numbers = #tpu.dot_dimension_numbers<[1], [0], [0], [1], [0, 0, 1, 1], [], []>} : vector<16x16xf32>, vector<16x32xf32>, vector<16x32xf32> -> vector<16x32xf32>
    %c0_12 = arith.constant 0 : index
    %c0_13 = arith.constant 0 : index
    %10 = vector.load %arg7[%c0_12, %c0_13] : memref<32x32xf32, #tpu.memory_space<vmem>>, vector<32x32xf32>
    %c0_14 = arith.constant 0 : index
    %c0_15 = arith.constant 0 : index
    %11 = vector.load %arg8[%c0_14, %c0_15] : memref<1x32xf32, #tpu.memory_space<vmem>>, vector<1x32xf32>
    %c0_16 = arith.constant 0 : index
    %c0_17 = arith.constant 0 : index
    %12 = vector.load %arg9[%c0_16, %c0_17] : memref<32x32xf32, #tpu.memory_space<vmem>>, vector<32x32xf32>
    %c0_18 = arith.constant 0 : index
    %c0_19 = arith.constant 0 : index
    %13 = vector.load %arg10[%c0_18, %c0_19] : memref<1x32xf32, #tpu.memory_space<vmem>>, vector<1x32xf32>
    %c0_20 = arith.constant 0 : index
    %c0_21 = arith.constant 0 : index
    %14 = vector.load %arg11[%c0_20, %c0_21] : memref<1x32xf32, #tpu.memory_space<vmem>>, vector<1x32xf32>
    %c0_22 = arith.constant 0 : index
    %c0_23 = arith.constant 0 : index
    %15 = vector.load %arg12[%c0_22, %c0_23] : memref<1x32xf32, #tpu.memory_space<vmem>>, vector<1x32xf32>
    %cst_24 = arith.constant dense<0.000000e+00> : vector<16x32xf32>
    %16 = tpu.matmul %9, %10, %cst_24 {dimension_numbers = #tpu.dot_dimension_numbers<[1], [0], [0], [1], [0, 0, 1, 1], [], []>} : vector<16x32xf32>, vector<32x32xf32>, vector<16x32xf32> -> vector<16x32xf32>
    %17 = vector.broadcast %11 : vector<1x32xf32> to vector<16x32xf32>
    %18 = arith.addf %16, %17 : vector<16x32xf32>
    %cst_25 = arith.constant dense<0.000000e+00> : vector<32xf32>
    %19 = vector.multi_reduction <add>, %18, %cst_25 [0] : vector<16x32xf32> to vector<32xf32>
    %20 = vector.shape_cast %19 : vector<32xf32> to vector<1x32xf32>
    %cst_26 = arith.constant 6.250000e-02 : f32
    %21 = vector.broadcast %cst_26 : f32 to vector<1x32xf32>
    %22 = arith.mulf %20, %21 : vector<1x32xf32>
    %23 = arith.mulf %18, %18 : vector<16x32xf32>
    %cst_27 = arith.constant dense<0.000000e+00> : vector<32xf32>
    %24 = vector.multi_reduction <add>, %23, %cst_27 [0] : vector<16x32xf32> to vector<32xf32>
    %25 = vector.shape_cast %24 : vector<32xf32> to vector<1x32xf32>
    %cst_28 = arith.constant 6.250000e-02 : f32
    %26 = vector.broadcast %cst_28 : f32 to vector<1x32xf32>
    %27 = arith.mulf %25, %26 : vector<1x32xf32>
    %28 = arith.mulf %22, %22 : vector<1x32xf32>
    %29 = arith.subf %27, %28 : vector<1x32xf32>
    %30 = vector.broadcast %22 : vector<1x32xf32> to vector<16x32xf32>
    %31 = arith.subf %18, %30 : vector<16x32xf32>
    %cst_29 = arith.constant 9.99999974E-6 : f32
    %32 = vector.broadcast %cst_29 : f32 to vector<1x32xf32>
    %33 = arith.addf %29, %32 : vector<1x32xf32>
    %34 = math.rsqrt %33 : vector<1x32xf32>
    %35 = vector.broadcast %34 : vector<1x32xf32> to vector<16x32xf32>
    %36 = arith.mulf %31, %35 : vector<16x32xf32>
    %37 = vector.broadcast %14 : vector<1x32xf32> to vector<16x32xf32>
    %38 = arith.mulf %36, %37 : vector<16x32xf32>
    %39 = vector.broadcast %15 : vector<1x32xf32> to vector<16x32xf32>
    %40 = arith.addf %38, %39 : vector<16x32xf32>
    %cst_30 = arith.constant 0.000000e+00 : f32
    %41 = vector.broadcast %cst_30 : f32 to vector<16x32xf32>
    %42 = arith.maximumf %40, %41 : vector<16x32xf32>
    %cst_31 = arith.constant dense<0.000000e+00> : vector<16x32xf32>
    %43 = tpu.matmul %42, %12, %cst_31 {dimension_numbers = #tpu.dot_dimension_numbers<[1], [0], [0], [1], [0, 0, 1, 1], [], []>} : vector<16x32xf32>, vector<32x32xf32>, vector<16x32xf32> -> vector<16x32xf32>
    %44 = vector.broadcast %13 : vector<1x32xf32> to vector<16x32xf32>
    %45 = arith.addf %43, %44 : vector<16x32xf32>
    %c0_32 = arith.constant 0 : index
    %c0_33 = arith.constant 0 : index
    %46 = vector.load %arg13[%c0_32, %c0_33] : memref<1x32xf32, #tpu.memory_space<vmem>>, vector<1x32xf32>
    %c0_34 = arith.constant 0 : index
    %c0_35 = arith.constant 0 : index
    %47 = vector.load %arg14[%c0_34, %c0_35] : memref<1x32xf32, #tpu.memory_space<vmem>>, vector<1x32xf32>
    %cst_36 = arith.constant dense<0.000000e+00> : vector<32xf32>
    %48 = vector.multi_reduction <add>, %45, %cst_36 [0] : vector<16x32xf32> to vector<32xf32>
    %49 = vector.shape_cast %48 : vector<32xf32> to vector<1x32xf32>
    %cst_37 = arith.constant 6.250000e-02 : f32
    %50 = vector.broadcast %cst_37 : f32 to vector<1x32xf32>
    %51 = arith.mulf %49, %50 : vector<1x32xf32>
    %52 = arith.mulf %45, %45 : vector<16x32xf32>
    %cst_38 = arith.constant dense<0.000000e+00> : vector<32xf32>
    %53 = vector.multi_reduction <add>, %52, %cst_38 [0] : vector<16x32xf32> to vector<32xf32>
    %54 = vector.shape_cast %53 : vector<32xf32> to vector<1x32xf32>
    %cst_39 = arith.constant 6.250000e-02 : f32
    %55 = vector.broadcast %cst_39 : f32 to vector<1x32xf32>
    %56 = arith.mulf %54, %55 : vector<1x32xf32>
    %57 = arith.mulf %51, %51 : vector<1x32xf32>
    %58 = arith.subf %56, %57 : vector<1x32xf32>
    %59 = vector.broadcast %51 : vector<1x32xf32> to vector<16x32xf32>
    %60 = arith.subf %45, %59 : vector<16x32xf32>
    %cst_40 = arith.constant 9.99999974E-6 : f32
    %61 = vector.broadcast %cst_40 : f32 to vector<1x32xf32>
    %62 = arith.addf %58, %61 : vector<1x32xf32>
    %63 = math.rsqrt %62 : vector<1x32xf32>
    %64 = vector.broadcast %63 : vector<1x32xf32> to vector<16x32xf32>
    %65 = arith.mulf %60, %64 : vector<16x32xf32>
    %66 = vector.broadcast %46 : vector<1x32xf32> to vector<16x32xf32>
    %67 = arith.mulf %65, %66 : vector<16x32xf32>
    %68 = vector.broadcast %47 : vector<1x32xf32> to vector<16x32xf32>
    %69 = arith.addf %67, %68 : vector<16x32xf32>
    %cst_41 = arith.constant 0.000000e+00 : f32
    %70 = vector.broadcast %cst_41 : f32 to vector<16x32xf32>
    %71 = arith.maximumf %69, %70 : vector<16x32xf32>
    %c0_42 = arith.constant 0 : index
    %c0_43 = arith.constant 0 : index
    %72 = vector.load %arg15[%c0_42, %c0_43] : memref<1x32xf32, #tpu.memory_space<vmem>>, vector<1x32xf32>
    %c0_44 = arith.constant 0 : index
    %c0_45 = arith.constant 0 : index
    %73 = vector.load %arg16[%c0_44, %c0_45] : memref<1x32xf32, #tpu.memory_space<vmem>>, vector<1x32xf32>
    %cst_46 = arith.constant dense<0.000000e+00> : vector<32xf32>
    %74 = vector.multi_reduction <add>, %71, %cst_46 [0] : vector<16x32xf32> to vector<32xf32>
    %75 = vector.shape_cast %74 : vector<32xf32> to vector<1x32xf32>
    %cst_47 = arith.constant 6.250000e-02 : f32
    %76 = vector.broadcast %cst_47 : f32 to vector<1x32xf32>
    %77 = arith.mulf %75, %76 : vector<1x32xf32>
    %78 = arith.mulf %71, %71 : vector<16x32xf32>
    %cst_48 = arith.constant dense<0.000000e+00> : vector<32xf32>
    %79 = vector.multi_reduction <add>, %78, %cst_48 [0] : vector<16x32xf32> to vector<32xf32>
    %80 = vector.shape_cast %79 : vector<32xf32> to vector<1x32xf32>
    %cst_49 = arith.constant 6.250000e-02 : f32
    %81 = vector.broadcast %cst_49 : f32 to vector<1x32xf32>
    %82 = arith.mulf %80, %81 : vector<1x32xf32>
    %83 = arith.mulf %77, %77 : vector<1x32xf32>
    %84 = arith.subf %82, %83 : vector<1x32xf32>
    %85 = vector.broadcast %77 : vector<1x32xf32> to vector<16x32xf32>
    %86 = arith.subf %71, %85 : vector<16x32xf32>
    %cst_50 = arith.constant 9.99999974E-6 : f32
    %87 = vector.broadcast %cst_50 : f32 to vector<1x32xf32>
    %88 = arith.addf %84, %87 : vector<1x32xf32>
    %89 = math.rsqrt %88 : vector<1x32xf32>
    %90 = vector.broadcast %89 : vector<1x32xf32> to vector<16x32xf32>
    %91 = arith.mulf %86, %90 : vector<16x32xf32>
    %92 = vector.broadcast %72 : vector<1x32xf32> to vector<16x32xf32>
    %93 = arith.mulf %91, %92 : vector<16x32xf32>
    %94 = vector.broadcast %73 : vector<1x32xf32> to vector<16x32xf32>
    %95 = arith.addf %93, %94 : vector<16x32xf32>
    %cst_51 = arith.constant 0.000000e+00 : f32
    %96 = vector.broadcast %cst_51 : f32 to vector<16x32xf32>
    %97 = arith.maximumf %95, %96 : vector<16x32xf32>
    %cst_52 = arith.constant dense<0.000000e+00> : vector<16x32xf32>
    %98 = tpu.matmul %1, %97, %cst_52 {dimension_numbers = #tpu.dot_dimension_numbers<[1], [0], [0], [1], [0, 0, 1, 1], [], []>} : vector<16x16xf32>, vector<16x32xf32>, vector<16x32xf32> -> vector<16x32xf32>
    %c0_53 = arith.constant 0 : index
    %c0_54 = arith.constant 0 : index
    %99 = vector.load %arg17[%c0_53, %c0_54] : memref<32x32xf32, #tpu.memory_space<vmem>>, vector<32x32xf32>
    %c0_55 = arith.constant 0 : index
    %c0_56 = arith.constant 0 : index
    %100 = vector.load %arg18[%c0_55, %c0_56] : memref<1x32xf32, #tpu.memory_space<vmem>>, vector<1x32xf32>
    %c0_57 = arith.constant 0 : index
    %c0_58 = arith.constant 0 : index
    %101 = vector.load %arg19[%c0_57, %c0_58] : memref<32x32xf32, #tpu.memory_space<vmem>>, vector<32x32xf32>
    %c0_59 = arith.constant 0 : index
    %c0_60 = arith.constant 0 : index
    %102 = vector.load %arg20[%c0_59, %c0_60] : memref<1x32xf32, #tpu.memory_space<vmem>>, vector<1x32xf32>
    %c0_61 = arith.constant 0 : index
    %c0_62 = arith.constant 0 : index
    %103 = vector.load %arg21[%c0_61, %c0_62] : memref<1x32xf32, #tpu.memory_space<vmem>>, vector<1x32xf32>
    %c0_63 = arith.constant 0 : index
    %c0_64 = arith.constant 0 : index
    %104 = vector.load %arg22[%c0_63, %c0_64] : memref<1x32xf32, #tpu.memory_space<vmem>>, vector<1x32xf32>
    %cst_65 = arith.constant dense<0.000000e+00> : vector<16x32xf32>
    %105 = tpu.matmul %98, %99, %cst_65 {dimension_numbers = #tpu.dot_dimension_numbers<[1], [0], [0], [1], [0, 0, 1, 1], [], []>} : vector<16x32xf32>, vector<32x32xf32>, vector<16x32xf32> -> vector<16x32xf32>
    %106 = vector.broadcast %100 : vector<1x32xf32> to vector<16x32xf32>
    %107 = arith.addf %105, %106 : vector<16x32xf32>
    %cst_66 = arith.constant dense<0.000000e+00> : vector<32xf32>
    %108 = vector.multi_reduction <add>, %107, %cst_66 [0] : vector<16x32xf32> to vector<32xf32>
    %109 = vector.shape_cast %108 : vector<32xf32> to vector<1x32xf32>
    %cst_67 = arith.constant 6.250000e-02 : f32
    %110 = vector.broadcast %cst_67 : f32 to vector<1x32xf32>
    %111 = arith.mulf %109, %110 : vector<1x32xf32>
    %112 = arith.mulf %107, %107 : vector<16x32xf32>
    %cst_68 = arith.constant dense<0.000000e+00> : vector<32xf32>
    %113 = vector.multi_reduction <add>, %112, %cst_68 [0] : vector<16x32xf32> to vector<32xf32>
    %114 = vector.shape_cast %113 : vector<32xf32> to vector<1x32xf32>
    %cst_69 = arith.constant 6.250000e-02 : f32
    %115 = vector.broadcast %cst_69 : f32 to vector<1x32xf32>
    %116 = arith.mulf %114, %115 : vector<1x32xf32>
    %117 = arith.mulf %111, %111 : vector<1x32xf32>
    %118 = arith.subf %116, %117 : vector<1x32xf32>
    %119 = vector.broadcast %111 : vector<1x32xf32> to vector<16x32xf32>
    %120 = arith.subf %107, %119 : vector<16x32xf32>
    %cst_70 = arith.constant 9.99999974E-6 : f32
    %121 = vector.broadcast %cst_70 : f32 to vector<1x32xf32>
    %122 = arith.addf %118, %121 : vector<1x32xf32>
    %123 = math.rsqrt %122 : vector<1x32xf32>
    %124 = vector.broadcast %123 : vector<1x32xf32> to vector<16x32xf32>
    %125 = arith.mulf %120, %124 : vector<16x32xf32>
    %126 = vector.broadcast %103 : vector<1x32xf32> to vector<16x32xf32>
    %127 = arith.mulf %125, %126 : vector<16x32xf32>
    %128 = vector.broadcast %104 : vector<1x32xf32> to vector<16x32xf32>
    %129 = arith.addf %127, %128 : vector<16x32xf32>
    %cst_71 = arith.constant 0.000000e+00 : f32
    %130 = vector.broadcast %cst_71 : f32 to vector<16x32xf32>
    %131 = arith.maximumf %129, %130 : vector<16x32xf32>
    %cst_72 = arith.constant dense<0.000000e+00> : vector<16x32xf32>
    %132 = tpu.matmul %131, %101, %cst_72 {dimension_numbers = #tpu.dot_dimension_numbers<[1], [0], [0], [1], [0, 0, 1, 1], [], []>} : vector<16x32xf32>, vector<32x32xf32>, vector<16x32xf32> -> vector<16x32xf32>
    %133 = vector.broadcast %102 : vector<1x32xf32> to vector<16x32xf32>
    %134 = arith.addf %132, %133 : vector<16x32xf32>
    %c0_73 = arith.constant 0 : index
    %c0_74 = arith.constant 0 : index
    %135 = vector.load %arg23[%c0_73, %c0_74] : memref<1x32xf32, #tpu.memory_space<vmem>>, vector<1x32xf32>
    %c0_75 = arith.constant 0 : index
    %c0_76 = arith.constant 0 : index
    %136 = vector.load %arg24[%c0_75, %c0_76] : memref<1x32xf32, #tpu.memory_space<vmem>>, vector<1x32xf32>
    %cst_77 = arith.constant dense<0.000000e+00> : vector<32xf32>
    %137 = vector.multi_reduction <add>, %134, %cst_77 [0] : vector<16x32xf32> to vector<32xf32>
    %138 = vector.shape_cast %137 : vector<32xf32> to vector<1x32xf32>
    %cst_78 = arith.constant 6.250000e-02 : f32
    %139 = vector.broadcast %cst_78 : f32 to vector<1x32xf32>
    %140 = arith.mulf %138, %139 : vector<1x32xf32>
    %141 = arith.mulf %134, %134 : vector<16x32xf32>
    %cst_79 = arith.constant dense<0.000000e+00> : vector<32xf32>
    %142 = vector.multi_reduction <add>, %141, %cst_79 [0] : vector<16x32xf32> to vector<32xf32>
    %143 = vector.shape_cast %142 : vector<32xf32> to vector<1x32xf32>
    %cst_80 = arith.constant 6.250000e-02 : f32
    %144 = vector.broadcast %cst_80 : f32 to vector<1x32xf32>
    %145 = arith.mulf %143, %144 : vector<1x32xf32>
    %146 = arith.mulf %140, %140 : vector<1x32xf32>
    %147 = arith.subf %145, %146 : vector<1x32xf32>
    %148 = vector.broadcast %140 : vector<1x32xf32> to vector<16x32xf32>
    %149 = arith.subf %134, %148 : vector<16x32xf32>
    %cst_81 = arith.constant 9.99999974E-6 : f32
    %150 = vector.broadcast %cst_81 : f32 to vector<1x32xf32>
    %151 = arith.addf %147, %150 : vector<1x32xf32>
    %152 = math.rsqrt %151 : vector<1x32xf32>
    %153 = vector.broadcast %152 : vector<1x32xf32> to vector<16x32xf32>
    %154 = arith.mulf %149, %153 : vector<16x32xf32>
    %155 = vector.broadcast %135 : vector<1x32xf32> to vector<16x32xf32>
    %156 = arith.mulf %154, %155 : vector<16x32xf32>
    %157 = vector.broadcast %136 : vector<1x32xf32> to vector<16x32xf32>
    %158 = arith.addf %156, %157 : vector<16x32xf32>
    %cst_82 = arith.constant 0.000000e+00 : f32
    %159 = vector.broadcast %cst_82 : f32 to vector<16x32xf32>
    %160 = arith.maximumf %158, %159 : vector<16x32xf32>
    %c0_83 = arith.constant 0 : index
    %c0_84 = arith.constant 0 : index
    %161 = vector.load %arg25[%c0_83, %c0_84] : memref<1x32xf32, #tpu.memory_space<vmem>>, vector<1x32xf32>
    %c0_85 = arith.constant 0 : index
    %c0_86 = arith.constant 0 : index
    %162 = vector.load %arg26[%c0_85, %c0_86] : memref<1x32xf32, #tpu.memory_space<vmem>>, vector<1x32xf32>
    %cst_87 = arith.constant dense<0.000000e+00> : vector<32xf32>
    %163 = vector.multi_reduction <add>, %160, %cst_87 [0] : vector<16x32xf32> to vector<32xf32>
    %164 = vector.shape_cast %163 : vector<32xf32> to vector<1x32xf32>
    %cst_88 = arith.constant 6.250000e-02 : f32
    %165 = vector.broadcast %cst_88 : f32 to vector<1x32xf32>
    %166 = arith.mulf %164, %165 : vector<1x32xf32>
    %167 = arith.mulf %160, %160 : vector<16x32xf32>
    %cst_89 = arith.constant dense<0.000000e+00> : vector<32xf32>
    %168 = vector.multi_reduction <add>, %167, %cst_89 [0] : vector<16x32xf32> to vector<32xf32>
    %169 = vector.shape_cast %168 : vector<32xf32> to vector<1x32xf32>
    %cst_90 = arith.constant 6.250000e-02 : f32
    %170 = vector.broadcast %cst_90 : f32 to vector<1x32xf32>
    %171 = arith.mulf %169, %170 : vector<1x32xf32>
    %172 = arith.mulf %166, %166 : vector<1x32xf32>
    %173 = arith.subf %171, %172 : vector<1x32xf32>
    %174 = vector.broadcast %166 : vector<1x32xf32> to vector<16x32xf32>
    %175 = arith.subf %160, %174 : vector<16x32xf32>
    %cst_91 = arith.constant 9.99999974E-6 : f32
    %176 = vector.broadcast %cst_91 : f32 to vector<1x32xf32>
    %177 = arith.addf %173, %176 : vector<1x32xf32>
    %178 = math.rsqrt %177 : vector<1x32xf32>
    %179 = vector.broadcast %178 : vector<1x32xf32> to vector<16x32xf32>
    %180 = arith.mulf %175, %179 : vector<16x32xf32>
    %181 = vector.broadcast %161 : vector<1x32xf32> to vector<16x32xf32>
    %182 = arith.mulf %180, %181 : vector<16x32xf32>
    %183 = vector.broadcast %162 : vector<1x32xf32> to vector<16x32xf32>
    %184 = arith.addf %182, %183 : vector<16x32xf32>
    %cst_92 = arith.constant 0.000000e+00 : f32
    %185 = vector.broadcast %cst_92 : f32 to vector<16x32xf32>
    %186 = arith.maximumf %184, %185 : vector<16x32xf32>
    %c0_93 = arith.constant 0 : index
    %c0_94 = arith.constant 0 : index
    %187 = vector.load %arg27[%c0_93, %c0_94] : memref<32x32xf32, #tpu.memory_space<vmem>>, vector<32x32xf32>
    %c0_95 = arith.constant 0 : index
    %c0_96 = arith.constant 0 : index
    %188 = vector.load %arg28[%c0_95, %c0_96] : memref<1x32xf32, #tpu.memory_space<vmem>>, vector<1x32xf32>
    %cst_97 = arith.constant dense<0.000000e+00> : vector<16x32xf32>
    %189 = tpu.matmul %8, %187, %cst_97 {dimension_numbers = #tpu.dot_dimension_numbers<[1], [0], [0], [1], [0, 0, 1, 1], [], []>} : vector<16x32xf32>, vector<32x32xf32>, vector<16x32xf32> -> vector<16x32xf32>
    %190 = vector.broadcast %188 : vector<1x32xf32> to vector<16x32xf32>
    %191 = arith.addf %189, %190 : vector<16x32xf32>
    %c0_98 = arith.constant 0 : index
    %c0_99 = arith.constant 0 : index
    %192 = vector.load %arg29[%c0_98, %c0_99] : memref<32x32xf32, #tpu.memory_space<vmem>>, vector<32x32xf32>
    %c0_100 = arith.constant 0 : index
    %c0_101 = arith.constant 0 : index
    %193 = vector.load %arg30[%c0_100, %c0_101] : memref<1x32xf32, #tpu.memory_space<vmem>>, vector<1x32xf32>
    %cst_102 = arith.constant dense<0.000000e+00> : vector<16x32xf32>
    %194 = tpu.matmul %97, %192, %cst_102 {dimension_numbers = #tpu.dot_dimension_numbers<[1], [0], [0], [1], [0, 0, 1, 1], [], []>} : vector<16x32xf32>, vector<32x32xf32>, vector<16x32xf32> -> vector<16x32xf32>
    %195 = vector.broadcast %193 : vector<1x32xf32> to vector<16x32xf32>
    %196 = arith.addf %194, %195 : vector<16x32xf32>
    %197 = arith.addf %191, %196 : vector<16x32xf32>
    %c0_103 = arith.constant 0 : index
    %c0_104 = arith.constant 0 : index
    %198 = vector.load %arg31[%c0_103, %c0_104] : memref<32x32xf32, #tpu.memory_space<vmem>>, vector<32x32xf32>
    %c0_105 = arith.constant 0 : index
    %c0_106 = arith.constant 0 : index
    %199 = vector.load %arg32[%c0_105, %c0_106] : memref<1x32xf32, #tpu.memory_space<vmem>>, vector<1x32xf32>
    %cst_107 = arith.constant dense<0.000000e+00> : vector<16x32xf32>
    %200 = tpu.matmul %186, %198, %cst_107 {dimension_numbers = #tpu.dot_dimension_numbers<[1], [0], [0], [1], [0, 0, 1, 1], [], []>} : vector<16x32xf32>, vector<32x32xf32>, vector<16x32xf32> -> vector<16x32xf32>
    %201 = vector.broadcast %199 : vector<1x32xf32> to vector<16x32xf32>
    %202 = arith.addf %200, %201 : vector<16x32xf32>
    %203 = arith.addf %197, %202 : vector<16x32xf32>
    %c0_108 = arith.constant 0 : index
    %c0_109 = arith.constant 0 : index
    %204 = vector.load %arg33[%c0_108, %c0_109] : memref<32x32xf32, #tpu.memory_space<vmem>>, vector<32x32xf32>
    %c0_110 = arith.constant 0 : index
    %c0_111 = arith.constant 0 : index
    %205 = vector.load %arg34[%c0_110, %c0_111] : memref<32x32xf32, #tpu.memory_space<vmem>>, vector<32x32xf32>
    %c0_112 = arith.constant 0 : index
    %c0_113 = arith.constant 0 : index
    %206 = vector.load %arg35[%c0_112, %c0_113] : memref<1x32xf32, #tpu.memory_space<vmem>>, vector<1x32xf32>
    %cst_114 = arith.constant dense<0.000000e+00> : vector<16x32xf32>
    %207 = tpu.matmul %203, %204, %cst_114 {dimension_numbers = #tpu.dot_dimension_numbers<[1], [0], [0], [1], [0, 0, 1, 1], [], []>} : vector<16x32xf32>, vector<32x32xf32>, vector<16x32xf32> -> vector<16x32xf32>
    %cst_115 = arith.constant dense<0.000000e+00> : vector<16x32xf32>
    %208 = tpu.matmul %203, %205, %cst_115 {dimension_numbers = #tpu.dot_dimension_numbers<[1], [0], [0], [1], [0, 0, 1, 1], [], []>} : vector<16x32xf32>, vector<32x32xf32>, vector<16x32xf32> -> vector<16x32xf32>
    %cst_116 = arith.constant dense<0.000000e+00> : vector<32x32xf32>
    %209 = tpu.matmul %2, %207, %cst_116 {dimension_numbers = #tpu.dot_dimension_numbers<[1], [0], [0], [1], [0, 0, 1, 1], [], []>} : vector<32x16xf32>, vector<16x32xf32>, vector<32x32xf32> -> vector<32x32xf32>
    %cst_117 = arith.constant dense<0.000000e+00> : vector<32x32xf32>
    %210 = tpu.matmul %3, %208, %cst_117 {dimension_numbers = #tpu.dot_dimension_numbers<[1], [0], [0], [1], [0, 0, 1, 1], [], []>} : vector<32x16xf32>, vector<16x32xf32>, vector<32x32xf32> -> vector<32x32xf32>
    %211 = arith.addf %209, %210 : vector<32x32xf32>
    %212 = vector.broadcast %206 : vector<1x32xf32> to vector<32x32xf32>
    %213 = arith.addf %211, %212 : vector<32x32xf32>
    %c0_118 = arith.constant 0 : index
    %c0_119 = arith.constant 0 : index
    %214 = vector.load %arg36[%c0_118, %c0_119] : memref<32x8xf32, #tpu.memory_space<vmem>>, vector<32x8xf32>
    %c0_120 = arith.constant 0 : index
    %c0_121 = arith.constant 0 : index
    %215 = vector.load %arg37[%c0_120, %c0_121] : memref<1x8xf32, #tpu.memory_space<vmem>>, vector<1x8xf32>
    %c0_122 = arith.constant 0 : index
    %c0_123 = arith.constant 0 : index
    %216 = vector.load %arg38[%c0_122, %c0_123] : memref<1x32xf32, #tpu.memory_space<vmem>>, vector<1x32xf32>
    %c0_124 = arith.constant 0 : index
    %c0_125 = arith.constant 0 : index
    %217 = vector.load %arg39[%c0_124, %c0_125] : memref<1x32xf32, #tpu.memory_space<vmem>>, vector<1x32xf32>
    %cst_126 = arith.constant dense<0.000000e+00> : vector<32xf32>
    %218 = vector.multi_reduction <add>, %213, %cst_126 [0] : vector<32x32xf32> to vector<32xf32>
    %219 = vector.shape_cast %218 : vector<32xf32> to vector<1x32xf32>
    %cst_127 = arith.constant 3.125000e-02 : f32
    %220 = vector.broadcast %cst_127 : f32 to vector<1x32xf32>
    %221 = arith.mulf %219, %220 : vector<1x32xf32>
    %222 = arith.mulf %213, %213 : vector<32x32xf32>
    %cst_128 = arith.constant dense<0.000000e+00> : vector<32xf32>
    %223 = vector.multi_reduction <add>, %222, %cst_128 [0] : vector<32x32xf32> to vector<32xf32>
    %224 = vector.shape_cast %223 : vector<32xf32> to vector<1x32xf32>
    %cst_129 = arith.constant 3.125000e-02 : f32
    %225 = vector.broadcast %cst_129 : f32 to vector<1x32xf32>
    %226 = arith.mulf %224, %225 : vector<1x32xf32>
    %227 = arith.mulf %221, %221 : vector<1x32xf32>
    %228 = arith.subf %226, %227 : vector<1x32xf32>
    %229 = vector.broadcast %221 : vector<1x32xf32> to vector<32x32xf32>
    %230 = arith.subf %213, %229 : vector<32x32xf32>
    %cst_130 = arith.constant 9.99999974E-6 : f32
    %231 = vector.broadcast %cst_130 : f32 to vector<1x32xf32>
    %232 = arith.addf %228, %231 : vector<1x32xf32>
    %233 = math.rsqrt %232 : vector<1x32xf32>
    %234 = vector.broadcast %233 : vector<1x32xf32> to vector<32x32xf32>
    %235 = arith.mulf %230, %234 : vector<32x32xf32>
    %236 = vector.broadcast %216 : vector<1x32xf32> to vector<32x32xf32>
    %237 = arith.mulf %235, %236 : vector<32x32xf32>
    %238 = vector.broadcast %217 : vector<1x32xf32> to vector<32x32xf32>
    %239 = arith.addf %237, %238 : vector<32x32xf32>
    %cst_131 = arith.constant 0.000000e+00 : f32
    %240 = vector.broadcast %cst_131 : f32 to vector<32x32xf32>
    %241 = arith.maximumf %239, %240 : vector<32x32xf32>
    %cst_132 = arith.constant dense<0.000000e+00> : vector<32x8xf32>
    %242 = tpu.matmul %241, %214, %cst_132 {dimension_numbers = #tpu.dot_dimension_numbers<[1], [0], [0], [1], [0, 0, 1, 1], [], []>} : vector<32x32xf32>, vector<32x8xf32>, vector<32x8xf32> -> vector<32x8xf32>
    %243 = vector.broadcast %215 : vector<1x8xf32> to vector<32x8xf32>
    %244 = arith.addf %242, %243 : vector<32x8xf32>
    %c0_133 = arith.constant 0 : index
    %c0_134 = arith.constant 0 : index
    %245 = vector.load %arg40[%c0_133, %c0_134] : memref<32x8xf32, #tpu.memory_space<vmem>>, vector<32x8xf32>
    tpu.vector_store %arg40[%c0_133, %c0_134], %244 {strides = array<i32>} : memref<32x8xf32, #tpu.memory_space<vmem>>, vector<32x8xf32>,
    return
  }
  func.func @transform_0(%arg0: i32) -> (i32, i32) {
    %c0_i32 = arith.constant 0 : i32
    %c0_i32_0 = arith.constant 0 : i32
    %c0_i32_1 = arith.constant 0 : i32
    return %c0_i32, %c0_i32_0 : i32, i32
  }
  func.func @transform_1(%arg0: i32) -> (i32, i32) {
    %c0_i32 = arith.constant 0 : i32
    %c0_i32_0 = arith.constant 0 : i32
    %c0_i32_1 = arith.constant 0 : i32
    return %c0_i32, %c0_i32_0 : i32, i32
  }
  func.func @transform_2(%arg0: i32) -> (i32, i32) {
    %c0_i32 = arith.constant 0 : i32
    %c0_i32_0 = arith.constant 0 : i32
    %c0_i32_1 = arith.constant 0 : i32
    return %c0_i32, %c0_i32_0 : i32, i32
  }
  func.func @transform_3(%arg0: i32) -> (i32, i32) {
    %c0_i32 = arith.constant 0 : i32
    %c0_i32_0 = arith.constant 0 : i32
    %c0_i32_1 = arith.constant 0 : i32
    return %c0_i32, %c0_i32_0 : i32, i32
  }
  func.func @transform_4(%arg0: i32) -> (i32, i32) {
    %c0_i32 = arith.constant 0 : i32
    %c0_i32_0 = arith.constant 0 : i32
    %c0_i32_1 = arith.constant 0 : i32
    return %c0_i32, %c0_i32_0 : i32, i32
  }
  func.func @transform_5(%arg0: i32) -> (i32, i32) {
    %c0_i32 = arith.constant 0 : i32
    %c0_i32_0 = arith.constant 0 : i32
    %c0_i32_1 = arith.constant 0 : i32
    return %c0_i32, %c0_i32_0 : i32, i32
  }
  func.func @transform_6(%arg0: i32) -> (i32, i32) {
    %c0_i32 = arith.constant 0 : i32
    %c0_i32_0 = arith.constant 0 : i32
    %c0_i32_1 = arith.constant 0 : i32
    return %c0_i32, %c0_i32_0 : i32, i32
  }
  func.func @transform_7(%arg0: i32) -> (i32, i32) {
    %c0_i32 = arith.constant 0 : i32
    %c0_i32_0 = arith.constant 0 : i32
    %c0_i32_1 = arith.constant 0 : i32
    return %c0_i32, %c0_i32_0 : i32, i32
  }
  func.func @transform_8(%arg0: i32) -> (i32, i32) {
    %c0_i32 = arith.constant 0 : i32
    %c0_i32_0 = arith.constant 0 : i32
    %c0_i32_1 = arith.constant 0 : i32
    return %c0_i32, %c0_i32_0 : i32, i32
  }
  func.func @transform_9(%arg0: i32) -> (i32, i32) {
    %c0_i32 = arith.constant 0 : i32
    %c0_i32_0 = arith.constant 0 : i32
    %c0_i32_1 = arith.constant 0 : i32
    return %c0_i32, %c0_i32_0 : i32, i32
  }
  func.func @transform_10(%arg0: i32) -> (i32, i32) {
    %c0_i32 = arith.constant 0 : i32
    %c0_i32_0 = arith.constant 0 : i32
    %c0_i32_1 = arith.constant 0 : i32
    return %c0_i32, %c0_i32_0 : i32, i32
  }
  func.func @transform_11(%arg0: i32) -> (i32, i32) {
    %c0_i32 = arith.constant 0 : i32
    %c0_i32_0 = arith.constant 0 : i32
    %c0_i32_1 = arith.constant 0 : i32
    return %c0_i32, %c0_i32_0 : i32, i32
  }
  func.func @transform_12(%arg0: i32) -> (i32, i32) {
    %c0_i32 = arith.constant 0 : i32
    %c0_i32_0 = arith.constant 0 : i32
    %c0_i32_1 = arith.constant 0 : i32
    return %c0_i32, %c0_i32_0 : i32, i32
  }
  func.func @transform_13(%arg0: i32) -> (i32, i32) {
    %c0_i32 = arith.constant 0 : i32
    %c0_i32_0 = arith.constant 0 : i32
    %c0_i32_1 = arith.constant 0 : i32
    return %c0_i32, %c0_i32_0 : i32, i32
  }
  func.func @transform_14(%arg0: i32) -> (i32, i32) {
    %c0_i32 = arith.constant 0 : i32
    %c0_i32_0 = arith.constant 0 : i32
    %c0_i32_1 = arith.constant 0 : i32
    return %c0_i32, %c0_i32_0 : i32, i32
  }
  func.func @transform_15(%arg0: i32) -> (i32, i32) {
    %c0_i32 = arith.constant 0 : i32
    %c0_i32_0 = arith.constant 0 : i32
    %c0_i32_1 = arith.constant 0 : i32
    return %c0_i32, %c0_i32_0 : i32, i32
  }
  func.func @transform_16(%arg0: i32) -> (i32, i32) {
    %c0_i32 = arith.constant 0 : i32
    %c0_i32_0 = arith.constant 0 : i32
    %c0_i32_1 = arith.constant 0 : i32
    return %c0_i32, %c0_i32_0 : i32, i32
  }
  func.func @transform_17(%arg0: i32) -> (i32, i32) {
    %c0_i32 = arith.constant 0 : i32
    %c0_i32_0 = arith.constant 0 : i32
    %c0_i32_1 = arith.constant 0 : i32
    return %c0_i32, %c0_i32_0 : i32, i32
  }
  func.func @transform_18(%arg0: i32) -> (i32, i32) {
    %c0_i32 = arith.constant 0 : i32
    %c0_i32_0 = arith.constant 0 : i32
    %c0_i32_1 = arith.constant 0 : i32
    return %c0_i32, %c0_i32_0 : i32, i32
  }
  func.func @transform_19(%arg0: i32) -> (i32, i32) {
    %c0_i32 = arith.constant 0 : i32
    %c0_i32_0 = arith.constant 0 : i32
    %c0_i32_1 = arith.constant 0 : i32
    return %c0_i32, %c0_i32_0 : i32, i32
  }
  func.func @transform_20(%arg0: i32) -> (i32, i32) {
    %c0_i32 = arith.constant 0 : i32
    %c0_i32_0 = arith.constant 0 : i32
    %c0_i32_1 = arith.constant 0 : i32
    return %c0_i32, %c0_i32_0 : i32, i32
  }
  func.func @transform_21(%arg0: i32) -> (i32, i32) {
    %c0_i32 = arith.constant 0 : i32
    %c0_i32_0 = arith.constant 0 : i32
    %c0_i32_1 = arith.constant 0 : i32
    return %c0_i32, %c0_i32_0 : i32, i32
  }
  func.func @transform_22(%arg0: i32) -> (i32, i32) {
    %c0_i32 = arith.constant 0 : i32
    %c0_i32_0 = arith.constant 0 : i32
    %c0_i32_1 = arith.constant 0 : i32
    return %c0_i32, %c0_i32_0 : i32, i32
  }
  func.func @transform_23(%arg0: i32) -> (i32, i32) {
    %c0_i32 = arith.constant 0 : i32
    %c0_i32_0 = arith.constant 0 : i32
    %c0_i32_1 = arith.constant 0 : i32
    return %c0_i32, %c0_i32_0 : i32, i32
  }
  func.func @transform_24(%arg0: i32) -> (i32, i32) {
    %c0_i32 = arith.constant 0 : i32
    %c0_i32_0 = arith.constant 0 : i32
    %c0_i32_1 = arith.constant 0 : i32
    return %c0_i32, %c0_i32_0 : i32, i32
  }
  func.func @transform_25(%arg0: i32) -> (i32, i32) {
    %c0_i32 = arith.constant 0 : i32
    %c0_i32_0 = arith.constant 0 : i32
    %c0_i32_1 = arith.constant 0 : i32
    return %c0_i32, %c0_i32_0 : i32, i32
  }
  func.func @transform_26(%arg0: i32) -> (i32, i32) {
    %c0_i32 = arith.constant 0 : i32
    %c0_i32_0 = arith.constant 0 : i32
    %c0_i32_1 = arith.constant 0 : i32
    return %c0_i32, %c0_i32_0 : i32, i32
  }
  func.func @transform_27(%arg0: i32) -> (i32, i32) {
    %c0_i32 = arith.constant 0 : i32
    %c0_i32_0 = arith.constant 0 : i32
    %c0_i32_1 = arith.constant 0 : i32
    return %c0_i32, %c0_i32_0 : i32, i32
  }
  func.func @transform_28(%arg0: i32) -> (i32, i32) {
    %c0_i32 = arith.constant 0 : i32
    %c0_i32_0 = arith.constant 0 : i32
    %c0_i32_1 = arith.constant 0 : i32
    return %c0_i32, %c0_i32_0 : i32, i32
  }
  func.func @transform_29(%arg0: i32) -> (i32, i32) {
    %c0_i32 = arith.constant 0 : i32
    %c0_i32_0 = arith.constant 0 : i32
    %c0_i32_1 = arith.constant 0 : i32
    return %c0_i32, %c0_i32_0 : i32, i32
  }
  func.func @transform_30(%arg0: i32) -> (i32, i32) {
    %c0_i32 = arith.constant 0 : i32
    %c0_i32_0 = arith.constant 0 : i32
    %c0_i32_1 = arith.constant 0 : i32
    return %c0_i32, %c0_i32_0 : i32, i32
  }
  func.func @transform_31(%arg0: i32) -> (i32, i32) {
    %c0_i32 = arith.constant 0 : i32
    %c0_i32_0 = arith.constant 0 : i32
    %c0_i32_1 = arith.constant 0 : i32
    return %c0_i32, %c0_i32_0 : i32, i32
  }
  func.func @transform_32(%arg0: i32) -> (i32, i32) {
    %c0_i32 = arith.constant 0 : i32
    %c0_i32_0 = arith.constant 0 : i32
    %c0_i32_1 = arith.constant 0 : i32
    return %c0_i32, %c0_i32_0 : i32, i32
  }
  func.func @transform_33(%arg0: i32) -> (i32, i32) {
    %c0_i32 = arith.constant 0 : i32
    %c0_i32_0 = arith.constant 0 : i32
    %c0_i32_1 = arith.constant 0 : i32
    return %c0_i32, %c0_i32_0 : i32, i32
  }
  func.func @transform_34(%arg0: i32) -> (i32, i32) {
    %c0_i32 = arith.constant 0 : i32
    %c0_i32_0 = arith.constant 0 : i32
    %c0_i32_1 = arith.constant 0 : i32
    return %c0_i32, %c0_i32_0 : i32, i32
  }
  func.func @transform_35(%arg0: i32) -> (i32, i32) {
    %c0_i32 = arith.constant 0 : i32
    %c0_i32_0 = arith.constant 0 : i32
    %c0_i32_1 = arith.constant 0 : i32
    return %c0_i32, %c0_i32_0 : i32, i32
  }
  func.func @transform_36(%arg0: i32) -> (i32, i32) {
    %c0_i32 = arith.constant 0 : i32
    %c0_i32_0 = arith.constant 0 : i32
    %c0_i32_1 = arith.constant 0 : i32
    return %c0_i32, %c0_i32_0 : i32, i32
  }
  func.func @transform_37(%arg0: i32) -> (i32, i32) {
    %c0_i32 = arith.constant 0 : i32
    %c0_i32_0 = arith.constant 0 : i32
    %c0_i32_1 = arith.constant 0 : i32
    return %c0_i32, %c0_i32_0 : i32, i32
  }
  func.func @transform_38(%arg0: i32) -> (i32, i32) {
    %c0_i32 = arith.constant 0 : i32
    %c0_i32_0 = arith.constant 0 : i32
    %c0_i32_1 = arith.constant 0 : i32
    return %c0_i32, %c0_i32_0 : i32, i32
  }
  func.func @transform_39(%arg0: i32) -> (i32, i32) {
    %c0_i32 = arith.constant 0 : i32
    %c0_i32_0 = arith.constant 0 : i32
    %c0_i32_1 = arith.constant 0 : i32
    return %c0_i32, %c0_i32_0 : i32, i32
  }
}

</mosaic_0001>

<llo_original>
// kernel: tpu_custom_call.1
$region0: #{tpu_custom_call.1}
  #allocation0 [shape = 'u32[]', space=smem, size = 0x4, offset = 0x4, fixed_abs, tag = 'smem constant byte address 0x4 - core index']
  #allocation1 [shape = 'u32[144,128]{1,0:T(1,128)}', space=vmem, size = 0x12000, scoped, tag = 'internal scratch']
  %s0 = inlined_call_operand.smem [shape: u32[40], index: -1, kind: input, shape index: {}]
  %s1 = sld [smem:[%s0]]
  %s2 = scalar_lea.smem %s0, 1
  %s3 = sld [smem:[%s2]]
  %s4 = scalar_lea.smem %s0, 2
  %s5 = sld [smem:[%s4]]
  %s6 = scalar_lea.smem %s0, 3
  %s7 = sld [smem:[%s6]]
  %s8 = scalar_lea.smem %s0, 4
  %s9 = sld [smem:[%s8]]
  %s10 = scalar_lea.smem %s0, 5
  %s11 = sld [smem:[%s10]]
  %s12 = scalar_lea.smem %s0, 6
  %s13 = sld [smem:[%s12]]
  %s14 = scalar_lea.smem %s0, 7
  %s15 = sld [smem:[%s14]]
  %s16 = scalar_lea.smem %s0, 8
  %s17 = sld [smem:[%s16]]
  %s18 = scalar_lea.smem %s0, 9
  %s19 = sld [smem:[%s18]]
  %s20 = scalar_lea.smem %s0, 10
  %s21 = sld [smem:[%s20]]
  %s22 = scalar_lea.smem %s0, 11
  %s23 = sld [smem:[%s22]]
  %s24 = scalar_lea.smem %s0, 12
  %s25 = sld [smem:[%s24]]
  %s26 = scalar_lea.smem %s0, 13
  %s27 = sld [smem:[%s26]]
  %s28 = scalar_lea.smem %s0, 14
  %s29 = sld [smem:[%s28]]
  %s30 = scalar_lea.smem %s0, 15
  %s31 = sld [smem:[%s30]]
  %s32 = scalar_lea.smem %s0, 16
  %s33 = sld [smem:[%s32]]
  %s34 = scalar_lea.smem %s0, 17
  %s35 = sld [smem:[%s34]]
  %s36 = scalar_lea.smem %s0, 18
  %s37 = sld [smem:[%s36]]
  %s38 = scalar_lea.smem %s0, 19
  %s39 = sld [smem:[%s38]]
  %s40 = scalar_lea.smem %s0, 20
  %s41 = sld [smem:[%s40]]
  %s42 = scalar_lea.smem %s0, 21
  %s43 = sld [smem:[%s42]]
  %s44 = scalar_lea.smem %s0, 22
  %s45 = sld [smem:[%s44]]
  %s46 = scalar_lea.smem %s0, 23
  %s47 = sld [smem:[%s46]]
  %s48 = scalar_lea.smem %s0, 24
  %s49 = sld [smem:[%s48]]
  %s50 = scalar_lea.smem %s0, 25
  %s51 = sld [smem:[%s50]]
  %s52 = scalar_lea.smem %s0, 26
  %s53 = sld [smem:[%s52]]
  %s54 = scalar_lea.smem %s0, 27
  %s55 = sld [smem:[%s54]]
  %s56 = scalar_lea.smem %s0, 28
  %s57 = sld [smem:[%s56]]
  %s58 = scalar_lea.smem %s0, 29
  %s59 = sld [smem:[%s58]]
  %s60 = scalar_lea.smem %s0, 30
  %s61 = sld [smem:[%s60]]
  %s62 = scalar_lea.smem %s0, 31
  %s63 = sld [smem:[%s62]]
  %s64 = scalar_lea.smem %s0, 32
  %s65 = sld [smem:[%s64]]
  %s66 = scalar_lea.smem %s0, 33
  %s67 = sld [smem:[%s66]]
  %s68 = scalar_lea.smem %s0, 34
  %s69 = sld [smem:[%s68]]
  %s70 = scalar_lea.smem %s0, 35
  %s71 = sld [smem:[%s70]]
  %s72 = scalar_lea.smem %s0, 36
  %s73 = sld [smem:[%s72]]
  %s74 = scalar_lea.smem %s0, 37
  %s75 = sld [smem:[%s74]]
  %s76 = scalar_lea.smem %s0, 38
  %s77 = sld [smem:[%s76]]
  %s78 = scalar_lea.smem %s0, 39
  %s79 = sld [smem:[%s78]]
  %s80 = sld [smem:[#allocation0]]
  $region246: #{tpu_custom_call.1} parent=0
    _
  %s82 = ssub.s32 1, %s80
  %s83 = scalar_select 0, %s82, %s80
  $region1: #{tpu_custom_call.1} parent=0
    #allocation2 [shape = 'u8[8192]{0}', space=vmem, size = 0x2000, scoped, tag = 'input window, operand 1, single buffered']
    #allocation3 [shape = 's32[1]{0}', space=sflag, size = 0x4, scoped, tag = 'scoped memory for tpu_custom_call.1']
    #allocation4 [shape = 'u8[4096]{0}', space=vmem, size = 0x1000, scoped, tag = 'input window, operand 4, single buffered']
    #allocation5 [shape = 's32[1]{0}', space=sflag, size = 0x4, scoped, tag = 'scoped memory for tpu_custom_call.1']
    #allocation6 [shape = 'u8[512]{0}', space=vmem, size = 0x400, scoped, tag = 'input window, operand 5, single buffered']
    #allocation7 [shape = 'u8[512]{0}', space=vmem, size = 0x400, scoped, tag = 'input window, operand 7, single buffered']
    #allocation8 [shape = 's32[1]{0}', space=sflag, size = 0x4, scoped, tag = 'scoped memory for tpu_custom_call.1']
    #allocation9 [shape = 'u8[512]{0}', space=vmem, size = 0x400, scoped, tag = 'input window, operand 9, single buffered']
    #allocation10 [shape = 'u8[512]{0}', space=vmem, size = 0x400, scoped, tag = 'input window, operand 10, single buffered']
    #allocation11 [shape = 's32[1]{0}', space=sflag, size = 0x4, scoped, tag = 'scoped memory for tpu_custom_call.1']
    #allocation12 [shape = 'u8[512]{0}', space=vmem, size = 0x400, scoped, tag = 'input window, operand 11, single buffered']
    #allocation13 [shape = 'u8[512]{0}', space=vmem, size = 0x400, scoped, tag = 'input window, operand 12, single buffered']
    #allocation14 [shape = 's32[1]{0}', space=sflag, size = 0x4, scoped, tag = 'scoped memory for tpu_custom_call.1']
    #allocation15 [shape = 'u8[512]{0}', space=vmem, size = 0x400, scoped, tag = 'input window, operand 13, single buffered']
    #allocation16 [shape = 'u8[512]{0}', space=vmem, size = 0x400, scoped, tag = 'input window, operand 14, single buffered']
    #allocation17 [shape = 's32[1]{0}', space=sflag, size = 0x4, scoped, tag = 'scoped memory for tpu_custom_call.1']
    #allocation18 [shape = 'u8[512]{0}', space=vmem, size = 0x400, scoped, tag = 'input window, operand 15, single buffered']
    #allocation19 [shape = 'u8[512]{0}', space=vmem, size = 0x400, scoped, tag = 'input window, operand 17, single buffered']
    #allocation20 [shape = 's32[1]{0}', space=sflag, size = 0x4, scoped, tag = 'scoped memory for tpu_custom_call.1']
    #allocation21 [shape = 'u8[512]{0}', space=vmem, size = 0x400, scoped, tag = 'input window, operand 20, single buffered']
    #allocation22 [shape = 'u8[512]{0}', space=vmem, size = 0x400, scoped, tag = 'input window, operand 21, single buffered']
    #allocation23 [shape = 's32[1]{0}', space=sflag, size = 0x4, scoped, tag = 'scoped memory for tpu_custom_call.1']
    #allocation24 [shape = 'u8[512]{0}', space=vmem, size = 0x400, scoped, tag = 'input window, operand 22, single buffered']
    #allocation25 [shape = 'u8[512]{0}', space=vmem, size = 0x400, scoped, tag = 'input window, operand 23, single buffered']
    #allocation26 [shape = 's32[1]{0}', space=sflag, size = 0x4, scoped, tag = 'scoped memory for tpu_custom_call.1']
    #allocation27 [shape = 'u8[512]{0}', space=vmem, size = 0x400, scoped, tag = 'input window, operand 24, single buffered']
    #allocation28 [shape = 'u8[512]{0}', space=vmem, size = 0x400, scoped, tag = 'input window, operand 25, single buffered']
    #allocation29 [shape = 's32[1]{0}', space=sflag, size = 0x4, scoped, tag = 'scoped memory for tpu_custom_call.1']
    #allocation30 [shape = 'u8[512]{0}', space=vmem, size = 0x400, scoped, tag = 'input window, operand 27, single buffered']
    #allocation31 [shape = 'u8[16384]{0}', space=vmem, size = 0x4000, scoped, tag = 'input window, operand 33, single buffered']
    #allocation32 [shape = 's32[1]{0}', space=sflag, size = 0x4, scoped, tag = 'scoped memory for tpu_custom_call.1']
    %84 = vsyncpa [#allocation3], 0
    %85 = vsyncpa [#allocation5], 0
    %86 = vsyncpa [#allocation8], 0
    %87 = vsyncpa [#allocation11], 0
    %88 = vsyncpa [#allocation14], 0
    %89 = vsyncpa [#allocation17], 0
    %90 = vsyncpa [#allocation20], 0
    %91 = vsyncpa [#allocation23], 0
    %92 = vsyncpa [#allocation26], 0
    %93 = vsyncpa [#allocation29], 0
    %94 = vsyncpa [#allocation32], 0
    // Predicated region
    $region2: #{tpu_custom_call.1} parent=1 // pred_check
      _
    $region3: #{tpu_custom_call.1} parent=1 // pred_check_branch
      %96 = sbr.rel (0) target = $region5
    $region4: #{tpu_custom_call.1} parent=1 // pred_region
      _
    $region5: #{tpu_custom_call.1} parent=1 // pred_fallthru
      _
    // Predicated region
    $region6: #{tpu_custom_call.1} parent=1 // pred_check
      _
    $region7: #{tpu_custom_call.1} parent=1 // pred_check_branch
      %98 = sbr.rel (0) target = $region9
    $region8: #{tpu_custom_call.1} parent=1 // pred_region
      %s100 = ssub.s32 256, 256
      %101 = vsyncadd [#allocation3], %s100
      %s102 = sshll.u32 [#allocation2], 4
      %s103 = int_to_ptr.vmem [resolvable:$true] %s102
      %108 = dma.hbm_to_vmem [thread:$0]  %s3, 256, %s103, [#allocation3], 128, 128, 8
    $region9: #{tpu_custom_call.1} parent=1 // pred_fallthru
      _
    // Predicated region
    $region10: #{tpu_custom_call.1} parent=1 // pred_check
      _
    $region11: #{tpu_custom_call.1} parent=1 // pred_check_branch
      %110 = sbr.rel (0) target = $region13
    $region12: #{tpu_custom_call.1} parent=1 // pred_region
      _
    $region13: #{tpu_custom_call.1} parent=1 // pred_fallthru
      _
    // Predicated region
    $region14: #{tpu_custom_call.1} parent=1 // pred_check
      _
    $region15: #{tpu_custom_call.1} parent=1 // pred_check_branch
      %112 = sbr.rel (0) target = $region17
    $region16: #{tpu_custom_call.1} parent=1 // pred_region
      _
    $region17: #{tpu_custom_call.1} parent=1 // pred_fallthru
      _
    // Predicated region
    $region18: #{tpu_custom_call.1} parent=1 // pred_check
      _
    $region19: #{tpu_custom_call.1} parent=1 // pred_check_branch
      %114 = sbr.rel (0) target = $region21
    $region20: #{tpu_custom_call.1} parent=1 // pred_region
      %s116 = ssub.s32 128, 128
      %117 = vsyncadd [#allocation5], %s116
      %s119 = sshll.u32 [#allocation4], 4
      %s120 = int_to_ptr.vmem [resolvable:$true] %s119
      %122 = dma.hbm_to_vmem [thread:$0]  %s9, 128, %s120, [#allocation5]
    $region21: #{tpu_custom_call.1} parent=1 // pred_fallthru
      _
    // Predicated region
    $region22: #{tpu_custom_call.1} parent=1 // pred_check
      _
    $region23: #{tpu_custom_call.1} parent=1 // pred_check_branch
      %124 = sbr.rel (0) target = $region25
    $region24: #{tpu_custom_call.1} parent=1 // pred_region
      %s126 = ssub.s32 16, 16
      %127 = vsyncadd [#allocation5], %s126
      %s129 = sshll.u32 [#allocation6], 4
      %s130 = int_to_ptr.vmem [resolvable:$true] %s129
      %132 = dma.hbm_to_vmem [thread:$0]  %s11, 16, %s130, [#allocation5]
    $region25: #{tpu_custom_call.1} parent=1 // pred_fallthru
      _
    // Predicated region
    $region26: #{tpu_custom_call.1} parent=1 // pred_check
      _
    $region27: #{tpu_custom_call.1} parent=1 // pred_check_branch
      %134 = sbr.rel (0) target = $region29
    $region28: #{tpu_custom_call.1} parent=1 // pred_region
      _
    $region29: #{tpu_custom_call.1} parent=1 // pred_fallthru
      _
    // Predicated region
    $region30: #{tpu_custom_call.1} parent=1 // pred_check
      _
    $region31: #{tpu_custom_call.1} parent=1 // pred_check_branch
      %136 = sbr.rel (0) target = $region33
    $region32: #{tpu_custom_call.1} parent=1 // pred_region
      %s138 = ssub.s32 16, 16
      %139 = vsyncadd [#allocation8], %s138
      %s141 = sshll.u32 [#allocation7], 4
      %s142 = int_to_ptr.vmem [resolvable:$true] %s141
      %144 = dma.hbm_to_vmem [thread:$0]  %s15, 16, %s142, [#allocation8]
    $region33: #{tpu_custom_call.1} parent=1 // pred_fallthru
      _
    // Predicated region
    $region34: #{tpu_custom_call.1} parent=1 // pred_check
      _
    $region35: #{tpu_custom_call.1} parent=1 // pred_check_branch
      %146 = sbr.rel (0) target = $region37
    $region36: #{tpu_custom_call.1} parent=1 // pred_region
      _
    $region37: #{tpu_custom_call.1} parent=1 // pred_fallthru
      _
    // Predicated region
    $region38: #{tpu_custom_call.1} parent=1 // pred_check
      _
    $region39: #{tpu_custom_call.1} parent=1 // pred_check_branch
      %148 = sbr.rel (0) target = $region41
    $region40: #{tpu_custom_call.1} parent=1 // pred_region
      %s150 = ssub.s32 16, 16
      %151 = vsyncadd [#allocation8], %s150
      %s153 = sshll.u32 [#allocation9], 4
      %s154 = int_to_ptr.vmem [resolvable:$true] %s153
      %156 = dma.hbm_to_vmem [thread:$0]  %s19, 16, %s154, [#allocation8]
    $region41: #{tpu_custom_call.1} parent=1 // pred_fallthru
      _
    // Predicated region
    $region42: #{tpu_custom_call.1} parent=1 // pred_check
      _
    $region43: #{tpu_custom_call.1} parent=1 // pred_check_branch
      %158 = sbr.rel (0) target = $region45
    $region44: #{tpu_custom_call.1} parent=1 // pred_region
      %s160 = ssub.s32 16, 16
      %161 = vsyncadd [#allocation11], %s160
      %s163 = sshll.u32 [#allocation10], 4
      %s164 = int_to_ptr.vmem [resolvable:$true] %s163
      %166 = dma.hbm_to_vmem [thread:$0]  %s21, 16, %s164, [#allocation11]
    $region45: #{tpu_custom_call.1} parent=1 // pred_fallthru
      _
    // Predicated region
    $region46: #{tpu_custom_call.1} parent=1 // pred_check
      _
    $region47: #{tpu_custom_call.1} parent=1 // pred_check_branch
      %168 = sbr.rel (0) target = $region49
    $region48: #{tpu_custom_call.1} parent=1 // pred_region
      %s170 = ssub.s32 16, 16
      %171 = vsyncadd [#allocation11], %s170
      %s173 = sshll.u32 [#allocation12], 4
      %s174 = int_to_ptr.vmem [resolvable:$true] %s173
      %176 = dma.hbm_to_vmem [thread:$0]  %s23, 16, %s174, [#allocation11]
    $region49: #{tpu_custom_call.1} parent=1 // pred_fallthru
      _
    // Predicated region
    $region50: #{tpu_custom_call.1} parent=1 // pred_check
      _
    $region51: #{tpu_custom_call.1} parent=1 // pred_check_branch
      %178 = sbr.rel (0) target = $region53
    $region52: #{tpu_custom_call.1} parent=1 // pred_region
      %s180 = ssub.s32 16, 16
      %181 = vsyncadd [#allocation14], %s180
      %s183 = sshll.u32 [#allocation13], 4
      %s184 = int_to_ptr.vmem [resolvable:$true] %s183
      %186 = dma.hbm_to_vmem [thread:$0]  %s25, 16, %s184, [#allocation14]
    $region53: #{tpu_custom_call.1} parent=1 // pred_fallthru
      _
    // Predicated region
    $region54: #{tpu_custom_call.1} parent=1 // pred_check
      _
    $region55: #{tpu_custom_call.1} parent=1 // pred_check_branch
      %188 = sbr.rel (0) target = $region57
    $region56: #{tpu_custom_call.1} parent=1 // pred_region
      %s190 = ssub.s32 16, 16
      %191 = vsyncadd [#allocation14], %s190
      %s193 = sshll.u32 [#allocation15], 4
      %s194 = int_to_ptr.vmem [resolvable:$true] %s193
      %196 = dma.hbm_to_vmem [thread:$0]  %s27, 16, %s194, [#allocation14]
    $region57: #{tpu_custom_call.1} parent=1 // pred_fallthru
      _
    // Predicated region
    $region58: #{tpu_custom_call.1} parent=1 // pred_check
      _
    $region59: #{tpu_custom_call.1} parent=1 // pred_check_branch
      %198 = sbr.rel (0) target = $region61
    $region60: #{tpu_custom_call.1} parent=1 // pred_region
      %s200 = ssub.s32 16, 16
      %201 = vsyncadd [#allocation17], %s200
      %s203 = sshll.u32 [#allocation16], 4
      %s204 = int_to_ptr.vmem [resolvable:$true] %s203
      %206 = dma.hbm_to_vmem [thread:$0]  %s29, 16, %s204, [#allocation17]
    $region61: #{tpu_custom_call.1} parent=1 // pred_fallthru
      _
    // Predicated region
    $region62: #{tpu_custom_call.1} parent=1 // pred_check
      _
    $region63: #{tpu_custom_call.1} parent=1 // pred_check_branch
      %208 = sbr.rel (0) target = $region65
    $region64: #{tpu_custom_call.1} parent=1 // pred_region
      %s210 = ssub.s32 16, 16
      %211 = vsyncadd [#allocation17], %s210
      %s213 = sshll.u32 [#allocation18], 4
      %s214 = int_to_ptr.vmem [resolvable:$true] %s213
      %216 = dma.hbm_to_vmem [thread:$0]  %s31, 16, %s214, [#allocation17]
    $region65: #{tpu_custom_call.1} parent=1 // pred_fallthru
      _
    // Predicated region
    $region66: #{tpu_custom_call.1} parent=1 // pred_check
      _
    $region67: #{tpu_custom_call.1} parent=1 // pred_check_branch
      %218 = sbr.rel (0) target = $region69
    $region68: #{tpu_custom_call.1} parent=1 // pred_region
      _
    $region69: #{tpu_custom_call.1} parent=1 // pred_fallthru
      _
    // Predicated region
    $region70: #{tpu_custom_call.1} parent=1 // pred_check
      _
    $region71: #{tpu_custom_call.1} parent=1 // pred_check_branch
      %220 = sbr.rel (0) target = $region73
    $region72: #{tpu_custom_call.1} parent=1 // pred_region
      %s222 = ssub.s32 16, 16
      %223 = vsyncadd [#allocation20], %s222
      %s225 = sshll.u32 [#allocation19], 4
      %s226 = int_to_ptr.vmem [resolvable:$true] %s225
      %228 = dma.hbm_to_vmem [thread:$0]  %s35, 16, %s226, [#allocation20]
    $region73: #{tpu_custom_call.1} parent=1 // pred_fallthru
      _
    // Predicated region
    $region74: #{tpu_custom_call.1} parent=1 // pred_check
      _
    $region75: #{tpu_custom_call.1} parent=1 // pred_check_branch
      %230 = sbr.rel (0) target = $region77
    $region76: #{tpu_custom_call.1} parent=1 // pred_region
      _
    $region77: #{tpu_custom_call.1} parent=1 // pred_fallthru
      _
    // Predicated region
    $region78: #{tpu_custom_call.1} parent=1 // pred_check
      _
    $region79: #{tpu_custom_call.1} parent=1 // pred_check_branch
      %232 = sbr.rel (0) target = $region81
    $region80: #{tpu_custom_call.1} parent=1 // pred_region
      _
    $region81: #{tpu_custom_call.1} parent=1 // pred_fallthru
      _
    // Predicated region
    $region82: #{tpu_custom_call.1} parent=1 // pred_check
      _
    $region83: #{tpu_custom_call.1} parent=1 // pred_check_branch
      %234 = sbr.rel (0) target = $region85
    $region84: #{tpu_custom_call.1} parent=1 // pred_region
      %s236 = ssub.s32 16, 16
      %237 = vsyncadd [#allocation20], %s236
      %s239 = sshll.u32 [#allocation21], 4
      %s240 = int_to_ptr.vmem [resolvable:$true] %s239
      %242 = dma.hbm_to_vmem [thread:$0]  %s41, 16, %s240, [#allocation20]
    $region85: #{tpu_custom_call.1} parent=1 // pred_fallthru
      _
    // Predicated region
    $region86: #{tpu_custom_call.1} parent=1 // pred_check
      _
    $region87: #{tpu_custom_call.1} parent=1 // pred_check_branch
      %244 = sbr.rel (0) target = $region89
    $region88: #{tpu_custom_call.1} parent=1 // pred_region
      %s246 = ssub.s32 16, 16
      %247 = vsyncadd [#allocation23], %s246
      %s249 = sshll.u32 [#allocation22], 4
      %s250 = int_to_ptr.vmem [resolvable:$true] %s249
      %252 = dma.hbm_to_vmem [thread:$0]  %s43, 16, %s250, [#allocation23]
    $region89: #{tpu_custom_call.1} parent=1 // pred_fallthru
      _
    // Predicated region
    $region90: #{tpu_custom_call.1} parent=1 // pred_check
      _
    $region91: #{tpu_custom_call.1} parent=1 // pred_check_branch
      %254 = sbr.rel (0) target = $region93
    $region92: #{tpu_custom_call.1} parent=1 // pred_region
      %s256 = ssub.s32 16, 16
      %257 = vsyncadd [#allocation23], %s256
      %s259 = sshll.u32 [#allocation24], 4
      %s260 = int_to_ptr.vmem [resolvable:$true] %s259
      %262 = dma.hbm_to_vmem [thread:$0]  %s45, 16, %s260, [#allocation23]
    $region93: #{tpu_custom_call.1} parent=1 // pred_fallthru
      _
    // Predicated region
    $region94: #{tpu_custom_call.1} parent=1 // pred_check
      _
    $region95: #{tpu_custom_call.1} parent=1 // pred_check_branch
      %264 = sbr.rel (0) target = $region97
    $region96: #{tpu_custom_call.1} parent=1 // pred_region
      %s266 = ssub.s32 16, 16
      %267 = vsyncadd [#allocation26], %s266
      %s269 = sshll.u32 [#allocation25], 4
      %s270 = int_to_ptr.vmem [resolvable:$true] %s269
      %272 = dma.hbm_to_vmem [thread:$0]  %s47, 16, %s270, [#allocation26]
    $region97: #{tpu_custom_call.1} parent=1 // pred_fallthru
      _
    // Predicated region
    $region98: #{tpu_custom_call.1} parent=1 // pred_check
      _
    $region99: #{tpu_custom_call.1} parent=1 // pred_check_branch
      %274 = sbr.rel (0) target = $region101
    $region100: #{tpu_custom_call.1} parent=1 // pred_region
      %s276 = ssub.s32 16, 16
      %277 = vsyncadd [#allocation26], %s276
      %s279 = sshll.u32 [#allocation27], 4
      %s280 = int_to_ptr.vmem [resolvable:$true] %s279
      %282 = dma.hbm_to_vmem [thread:$0]  %s49, 16, %s280, [#allocation26]
    $region101: #{tpu_custom_call.1} parent=1 // pred_fallthru
      _
    // Predicated region
    $region102: #{tpu_custom_call.1} parent=1 // pred_check
      _
    $region103: #{tpu_custom_call.1} parent=1 // pred_check_branch
      %284 = sbr.rel (0) target = $region105
    $region104: #{tpu_custom_call.1} parent=1 // pred_region
      %s286 = ssub.s32 16, 16
      %287 = vsyncadd [#allocation29], %s286
      %s289 = sshll.u32 [#allocation28], 4
      %s290 = int_to_ptr.vmem [resolvable:$true] %s289
      %292 = dma.hbm_to_vmem [thread:$0]  %s51, 16, %s290, [#allocation29]
    $region105: #{tpu_custom_call.1} parent=1 // pred_fallthru
      _
    // Predicated region
    $region106: #{tpu_custom_call.1} parent=1 // pred_check
      _
    $region107: #{tpu_custom_call.1} parent=1 // pred_check_branch
      %294 = sbr.rel (0) target = $region109
    $region108: #{tpu_custom_call.1} parent=1 // pred_region
      _
    $region109: #{tpu_custom_call.1} parent=1 // pred_fallthru
      _
    // Predicated region
    $region110: #{tpu_custom_call.1} parent=1 // pred_check
      _
    $region111: #{tpu_custom_call.1} parent=1 // pred_check_branch
      %296 = sbr.rel (0) target = $region113
    $region112: #{tpu_custom_call.1} parent=1 // pred_region
      %s298 = ssub.s32 16, 16
      %299 = vsyncadd [#allocation29], %s298
      %s301 = sshll.u32 [#allocation30], 4
      %s302 = int_to_ptr.vmem [resolvable:$true] %s301
      %304 = dma.hbm_to_vmem [thread:$0]  %s55, 16, %s302, [#allocation29]
    $region113: #{tpu_custom_call.1} parent=1 // pred_fallthru
      _
    // Predicated region
    $region114: #{tpu_custom_call.1} parent=1 // pred_check
      _
    $region115: #{tpu_custom_call.1} parent=1 // pred_check_branch
      %306 = sbr.rel (0) target = $region117
    $region116: #{tpu_custom_call.1} parent=1 // pred_region
      _
    $region117: #{tpu_custom_call.1} parent=1 // pred_fallthru
      _
    // Predicated region
    $region118: #{tpu_custom_call.1} parent=1 // pred_check
      _
    $region119: #{tpu_custom_call.1} parent=1 // pred_check_branch
      %308 = sbr.rel (0) target = $region121
    $region120: #{tpu_custom_call.1} parent=1 // pred_region
      _
    $region121: #{tpu_custom_call.1} parent=1 // pred_fallthru
      _
    // Predicated region
    $region122: #{tpu_custom_call.1} parent=1 // pred_check
      _
    $region123: #{tpu_custom_call.1} parent=1 // pred_check_branch
      %310 = sbr.rel (0) target = $region125
    $region124: #{tpu_custom_call.1} parent=1 // pred_region
      _
    $region125: #{tpu_custom_call.1} parent=1 // pred_fallthru
      _
    // Predicated region
    $region126: #{tpu_custom_call.1} parent=1 // pred_check
      _
    $region127: #{tpu_custom_call.1} parent=1 // pred_check_branch
      %312 = sbr.rel (0) target = $region129
    $region128: #{tpu_custom_call.1} parent=1 // pred_region
      _
    $region129: #{tpu_custom_call.1} parent=1 // pred_fallthru
      _
    // Predicated region
    $region130: #{tpu_custom_call.1} parent=1 // pred_check
      _
    $region131: #{tpu_custom_call.1} parent=1 // pred_check_branch
      %314 = sbr.rel (0) target = $region133
    $region132: #{tpu_custom_call.1} parent=1 // pred_region
      _
    $region133: #{tpu_custom_call.1} parent=1 // pred_fallthru
      _
    // Predicated region
    $region134: #{tpu_custom_call.1} parent=1 // pred_check
      _
    $region135: #{tpu_custom_call.1} parent=1 // pred_check_branch
      %316 = sbr.rel (0) target = $region137
    $region136: #{tpu_custom_call.1} parent=1 // pred_region
      %s318 = ssub.s32 512, 512
      %319 = vsyncadd [#allocation32], %s318
      %s320 = sshll.u32 [#allocation31], 4
      %s321 = int_to_ptr.vmem [resolvable:$true] %s320
      %326 = dma.hbm_to_vmem [thread:$0]  %s67, 512, %s321, [#allocation32], 128, 128, 8
    $region137: #{tpu_custom_call.1} parent=1 // pred_fallthru
      _
    // Predicated region
    $region138: #{tpu_custom_call.1} parent=1 // pred_check
      _
    $region139: #{tpu_custom_call.1} parent=1 // pred_check_branch
      %328 = sbr.rel (0) target = $region141
    $region140: #{tpu_custom_call.1} parent=1 // pred_region
      _
    $region141: #{tpu_custom_call.1} parent=1 // pred_fallthru
      _
    // Predicated region
    $region142: #{tpu_custom_call.1} parent=1 // pred_check
      _
    $region143: #{tpu_custom_call.1} parent=1 // pred_check_branch
      %330 = sbr.rel (0) target = $region145
    $region144: #{tpu_custom_call.1} parent=1 // pred_region
      _
    $region145: #{tpu_custom_call.1} parent=1 // pred_fallthru
      _
    // Predicated region
    $region146: #{tpu_custom_call.1} parent=1 // pred_check
      _
    $region147: #{tpu_custom_call.1} parent=1 // pred_check_branch
      %332 = sbr.rel (0) target = $region149
    $region148: #{tpu_custom_call.1} parent=1 // pred_region
      _
    $region149: #{tpu_custom_call.1} parent=1 // pred_fallthru
      _
    // Predicated region
    $region150: #{tpu_custom_call.1} parent=1 // pred_check
      _
    $region151: #{tpu_custom_call.1} parent=1 // pred_check_branch
      %334 = sbr.rel (0) target = $region153
    $region152: #{tpu_custom_call.1} parent=1 // pred_region
      _
    $region153: #{tpu_custom_call.1} parent=1 // pred_fallthru
      _
    // Predicated region
    $region154: #{tpu_custom_call.1} parent=1 // pred_check
      _
    $region155: #{tpu_custom_call.1} parent=1 // pred_check_branch
      %336 = sbr.rel (0) target = $region157
    $region156: #{tpu_custom_call.1} parent=1 // pred_region
      _
    $region157: #{tpu_custom_call.1} parent=1 // pred_fallthru
      _
    // Predicated region
    $region158: #{tpu_custom_call.1} parent=1 // pred_check
      _
    $region159: #{tpu_custom_call.1} parent=1 // pred_check_branch
      %338 = sbr.rel (0) target = $region161
    $region160: #{tpu_custom_call.1} parent=1 // pred_region
      %339 = dma.done [#allocation3], 256
    $region161: #{tpu_custom_call.1} parent=1 // pred_fallthru
      _
    // Predicated region
    $region162: #{tpu_custom_call.1} parent=1 // pred_check
      _
    $region163: #{tpu_custom_call.1} parent=1 // pred_check_branch
      %341 = sbr.rel (0) target = $region165
    $region164: #{tpu_custom_call.1} parent=1 // pred_region
      %342 = dma.done [#allocation5], 128
    $region165: #{tpu_custom_call.1} parent=1 // pred_fallthru
      _
    // Predicated region
    $region166: #{tpu_custom_call.1} parent=1 // pred_check
      _
    $region167: #{tpu_custom_call.1} parent=1 // pred_check_branch
      %344 = sbr.rel (0) target = $region169
    $region168: #{tpu_custom_call.1} parent=1 // pred_region
      %345 = dma.done [#allocation5], 16
    $region169: #{tpu_custom_call.1} parent=1 // pred_fallthru
      _
    // Predicated region
    $region170: #{tpu_custom_call.1} parent=1 // pred_check
      _
    $region171: #{tpu_custom_call.1} parent=1 // pred_check_branch
      %347 = sbr.rel (0) target = $region173
    $region172: #{tpu_custom_call.1} parent=1 // pred_region
      %348 = dma.done [#allocation8], 16
    $region173: #{tpu_custom_call.1} parent=1 // pred_fallthru
      _
    // Predicated region
    $region174: #{tpu_custom_call.1} parent=1 // pred_check
      _
    $region175: #{tpu_custom_call.1} parent=1 // pred_check_branch
      %350 = sbr.rel (0) target = $region177
    $region176: #{tpu_custom_call.1} parent=1 // pred_region
      %351 = dma.done [#allocation8], 16
    $region177: #{tpu_custom_call.1} parent=1 // pred_fallthru
      _
    // Predicated region
    $region178: #{tpu_custom_call.1} parent=1 // pred_check
      _
    $region179: #{tpu_custom_call.1} parent=1 // pred_check_branch
      %353 = sbr.rel (0) target = $region181
    $region180: #{tpu_custom_call.1} parent=1 // pred_region
      %354 = dma.done [#allocation11], 16
    $region181: #{tpu_custom_call.1} parent=1 // pred_fallthru
      _
    // Predicated region
    $region182: #{tpu_custom_call.1} parent=1 // pred_check
      _
    $region183: #{tpu_custom_call.1} parent=1 // pred_check_branch
      %356 = sbr.rel (0) target = $region185
    $region184: #{tpu_custom_call.1} parent=1 // pred_region
      %357 = dma.done [#allocation11], 16
    $region185: #{tpu_custom_call.1} parent=1 // pred_fallthru
      _
    // Predicated region
    $region186: #{tpu_custom_call.1} parent=1 // pred_check
      _
    $region187: #{tpu_custom_call.1} parent=1 // pred_check_branch
      %359 = sbr.rel (0) target = $region189
    $region188: #{tpu_custom_call.1} parent=1 // pred_region
      %360 = dma.done [#allocation14], 16
    $region189: #{tpu_custom_call.1} parent=1 // pred_fallthru
      _
    // Predicated region
    $region190: #{tpu_custom_call.1} parent=1 // pred_check
      _
    $region191: #{tpu_custom_call.1} parent=1 // pred_check_branch
      %362 = sbr.rel (0) target = $region193
    $region192: #{tpu_custom_call.1} parent=1 // pred_region
      %363 = dma.done [#allocation14], 16
    $region193: #{tpu_custom_call.1} parent=1 // pred_fallthru
      _
    // Predicated region
    $region194: #{tpu_custom_call.1} parent=1 // pred_check
      _
    $region195: #{tpu_custom_call.1} parent=1 // pred_check_branch
      %365 = sbr.rel (0) target = $region197
    $region196: #{tpu_custom_call.1} parent=1 // pred_region
      %366 = dma.done [#allocation17], 16
    $region197: #{tpu_custom_call.1} parent=1 // pred_fallthru
      _
    // Predicated region
    $region198: #{tpu_custom_call.1} parent=1 // pred_check
      _
    $region199: #{tpu_custom_call.1} parent=1 // pred_check_branch
      %368 = sbr.rel (0) target = $region201
    $region200: #{tpu_custom_call.1} parent=1 // pred_region
      %369 = dma.done [#allocation17], 16
    $region201: #{tpu_custom_call.1} parent=1 // pred_fallthru
      _
    // Predicated region
    $region202: #{tpu_custom_call.1} parent=1 // pred_check
      _
    $region203: #{tpu_custom_call.1} parent=1 // pred_check_branch
      %371 = sbr.rel (0) target = $region205
    $region204: #{tpu_custom_call.1} parent=1 // pred_region
      %372 = dma.done [#allocation20], 16
    $region205: #{tpu_custom_call.1} parent=1 // pred_fallthru
      _
    // Predicated region
    $region206: #{tpu_custom_call.1} parent=1 // pred_check
      _
    $region207: #{tpu_custom_call.1} parent=1 // pred_check_branch
      %374 = sbr.rel (0) target = $region209
    $region208: #{tpu_custom_call.1} parent=1 // pred_region
      %375 = dma.done [#allocation20], 16
    $region209: #{tpu_custom_call.1} parent=1 // pred_fallthru
      _
    // Predicated region
    $region210: #{tpu_custom_call.1} parent=1 // pred_check
      _
    $region211: #{tpu_custom_call.1} parent=1 // pred_check_branch
      %377 = sbr.rel (0) target = $region213
    $region212: #{tpu_custom_call.1} parent=1 // pred_region
      %378 = dma.done [#allocation23], 16
    $region213: #{tpu_custom_call.1} parent=1 // pred_fallthru
      _
    // Predicated region
    $region214: #{tpu_custom_call.1} parent=1 // pred_check
      _
    $region215: #{tpu_custom_call.1} parent=1 // pred_check_branch
      %380 = sbr.rel (0) target = $region217
    $region216: #{tpu_custom_call.1} parent=1 // pred_region
      %381 = dma.done [#allocation23], 16
    $region217: #{tpu_custom_call.1} parent=1 // pred_fallthru
      _
    // Predicated region
    $region218: #{tpu_custom_call.1} parent=1 // pred_check
      _
    $region219: #{tpu_custom_call.1} parent=1 // pred_check_branch
      %383 = sbr.rel (0) target = $region221
    $region220: #{tpu_custom_call.1} parent=1 // pred_region
      %384 = dma.done [#allocation26], 16
    $region221: #{tpu_custom_call.1} parent=1 // pred_fallthru
      _
    // Predicated region
    $region222: #{tpu_custom_call.1} parent=1 // pred_check
      _
    $region223: #{tpu_custom_call.1} parent=1 // pred_check_branch
      %386 = sbr.rel (0) target = $region225
    $region224: #{tpu_custom_call.1} parent=1 // pred_region
      %387 = dma.done [#allocation26], 16
    $region225: #{tpu_custom_call.1} parent=1 // pred_fallthru
      _
    // Predicated region
    $region226: #{tpu_custom_call.1} parent=1 // pred_check
      _
    $region227: #{tpu_custom_call.1} parent=1 // pred_check_branch
      %389 = sbr.rel (0) target = $region229
    $region228: #{tpu_custom_call.1} parent=1 // pred_region
      %390 = dma.done [#allocation29], 16
    $region229: #{tpu_custom_call.1} parent=1 // pred_fallthru
      _
    // Predicated region
    $region230: #{tpu_custom_call.1} parent=1 // pred_check
      _
    $region231: #{tpu_custom_call.1} parent=1 // pred_check_branch
      %392 = sbr.rel (0) target = $region233
    $region232: #{tpu_custom_call.1} parent=1 // pred_region
      %393 = dma.done [#allocation29], 16
    $region233: #{tpu_custom_call.1} parent=1 // pred_fallthru
      _
    // Predicated region
    $region234: #{tpu_custom_call.1} parent=1 // pred_check
      _
    $region235: #{tpu_custom_call.1} parent=1 // pred_check_branch
      %395 = sbr.rel (0) target = $region237
    $region236: #{tpu_custom_call.1} parent=1 // pred_region
      %396 = dma.done [#allocation32], 512
    $region237: #{tpu_custom_call.1} parent=1 // pred_fallthru
      _
    %v397 = vld [vmem:[%s1] sm:$0xff]
    %v398 = vld [vmem:[%s1 + $0x8] sm:$0xff]
    %v399 = vld [vmem:[#allocation2] sm:$0xff]
    %v400 = vld [vmem:[#allocation2 + $0x8] sm:$0xff]
    %v401 = vld [vmem:[%s5] sm:$0xff]
    %v402 = vld [vmem:[%s5 + $0x8] sm:$0xff]
    %v403 = vld [vmem:[%s5 + $0x10] sm:$0xff]
    %v404 = vld [vmem:[%s5 + $0x18] sm:$0xff]
    %v405 = vld [vmem:[%s7] sm:$0xff]
    %v406 = vld [vmem:[%s7 + $0x8] sm:$0xff]
    %v407 = vld [vmem:[%s7 + $0x10] sm:$0xff]
    %v408 = vld [vmem:[%s7 + $0x18] sm:$0xff]
    %v409 = vld [vmem:[#allocation4] sm:$0xff]
    %v410 = vld [vmem:[#allocation6] sm:$0x1]
    %v412 = vlaneseq
    %v413 = vshrl.u32 %v412, 7
    %v414 = vsub.s32 0, %v413
    %v415 = vrot.slane %v410, %v414
    %vm417 = vcmask 64512
    %v419 = vsel %vm417, %v397, 0
    %v422 = vsel %vm417, %v398, 0
    %424 = vmatprep.subr.mxu0 0.0
    %425 = vmatpush1.msra.mxu0 %v409
    %426 = vmatprep.subr.mxu0 0.0
    %427 = vmatpush1.msra.mxu0 0.0
    %428 = vmatprep.subr.mxu0 0.0
    %429 = vmatpush1.msra.mxu0 0.0
    %430 = vmatprep.subr.mxu0 0.0
    %431 = vmatpush1.msra.mxu0 0.0
    %432 = vmatprep.subr.mxu0 0.0
    %433 = vmatpush1.msra.mxu0 0.0
    %434 = vmatprep.subr.mxu0 0.0
    %435 = vmatpush1.msra.mxu0 0.0
    %436 = vmatprep.subr.mxu0 0.0
    %437 = vmatpush1.msra.mxu0 0.0
    %438 = vmatprep.subr.mxu0 0.0
    %439 = vmatpush1.msra.mxu0 0.0
    %440 = vmatprep.subr.mxu0 0.0
    %441 = vmatpush1.msra.mxu0 0.0
    %442 = vmatprep.subr.mxu0 0.0
    %443 = vmatpush1.msra.mxu0 0.0
    %444 = vmatprep.subr.mxu0 0.0
    %445 = vmatpush1.msra.mxu0 0.0
    %446 = vmatprep.subr.mxu0 0.0
    %447 = vmatpush1.msra.mxu0 0.0
    %448 = vmatprep.subr.mxu0 0.0
    %449 = vmatpush1.msra.mxu0 0.0
    %450 = vmatprep.subr.mxu0 0.0
    %451 = vmatpush1.msra.mxu0 0.0
    %452 = vmatprep.subr.mxu0 0.0
    %453 = vmatpush1.msra.mxu0 0.0
    %454 = vmatprep.subr.mxu0 0.0
    %455 = vmatpush1.msra.mxu0 0.0
    %456 = vmatprep.subr.mxu0 0.0
    %457 = vmatpush1.msra.mxu0 0.0
    %458 = vmatprep.subr.mxu0 0.0
    %459 = vmatpush1.msra.mxu0 0.0
    %460 = vmatprep.subr.mxu0 0.0
    %461 = vmatpush1.msra.mxu0 0.0
    %462 = vmatprep.subr.mxu0 0.0
    %463 = vmatpush1.msra.mxu0 0.0
    %464 = vmatprep.subr.mxu0 0.0
    %465 = vmatpush1.msra.mxu0 0.0
    %466 = vmatprep.subr.mxu0 0.0
    %467 = vmatpush1.msra.mxu0 0.0
    %468 = vmatprep.subr.mxu0 0.0
    %469 = vmatpush1.msra.mxu0 0.0
    %470 = vmatprep.subr.mxu0 0.0
    %471 = vmatpush1.msra.mxu0 0.0
    %472 = vmatprep.subr.mxu0 0.0
    %473 = vmatpush1.msra.mxu0 0.0
    %474 = vmatprep.subr.mxu0 0.0
    %475 = vmatpush1.msra.mxu0 0.0
    %476 = vmatprep.subr.mxu0 0.0
    %477 = vmatpush1.msra.mxu0 0.0
    %478 = vmatprep.subr.mxu0 0.0
    %479 = vmatpush1.msra.mxu0 0.0
    %480 = vmatprep.subr.mxu0 0.0
    %481 = vmatpush1.msra.mxu0 0.0
    %482 = vmatprep.subr.mxu0 0.0
    %483 = vmatpush1.msra.mxu0 0.0
    %484 = vmatprep.subr.mxu0 0.0
    %485 = vmatpush1.msra.mxu0 0.0
    %486 = vmatprep.subr.mxu0 0.0
    %487 = vmatpush1.msra.mxu0 0.0
    %488 = vmatprep.mubr.f32.mxu0 0.0
    %489 = vmatmul.mubr.f32.gmra.mrb[0].mxu0 %v419
    %v490 = vpop.f32.mrb[0].mxu0
    %v491 = vadd.f32 %v415, %v490
    %v492 = vpop.f32.mrb[0].mxu0
    %493 = vmatprep.mubr.f32.mxu0 0.0
    %494 = vmatmul.mubr.f32.gmra.mrb[0].mxu0 %v422
    %v495 = vpop.f32.mrb[0].mxu0
    %v496 = vadd.f32 %v415, %v495
    %v497 = vpop.f32.mrb[0].mxu0
    %498 = vdwg.mxu0
    %vm499 = vcmask 130048
    %v501 = vsel %vm499, %v399, 0
    %v504 = vsel %vm499, %v400, 0
    %506 = vmatprep.subr.mxu0 0.0
    %507 = vmatpush1.msra.mxu0 %v491
    %508 = vmatprep.subr.mxu0 0.0
    %509 = vmatpush1.msra.mxu0 %v496
    %510 = vmatprep.subr.mxu0 0.0
    %511 = vmatpush1.msra.mxu0 0.0
    %512 = vmatprep.subr.mxu0 0.0
    %513 = vmatpush1.msra.mxu0 0.0
    %514 = vmatprep.subr.mxu0 0.0
    %515 = vmatpush1.msra.mxu0 0.0
    %516 = vmatprep.subr.mxu0 0.0
    %517 = vmatpush1.msra.mxu0 0.0
    %518 = vmatprep.subr.mxu0 0.0
    %519 = vmatpush1.msra.mxu0 0.0
    %520 = vmatprep.subr.mxu0 0.0
    %521 = vmatpush1.msra.mxu0 0.0
    %522 = vmatprep.subr.mxu0 0.0
    %523 = vmatpush1.msra.mxu0 0.0
    %524 = vmatprep.subr.mxu0 0.0
    %525 = vmatpush1.msra.mxu0 0.0
    %526 = vmatprep.subr.mxu0 0.0
    %527 = vmatpush1.msra.mxu0 0.0
    %528 = vmatprep.subr.mxu0 0.0
    %529 = vmatpush1.msra.mxu0 0.0
    %530 = vmatprep.subr.mxu0 0.0
    %531 = vmatpush1.msra.mxu0 0.0
    %532 = vmatprep.subr.mxu0 0.0
    %533 = vmatpush1.msra.mxu0 0.0
    %534 = vmatprep.subr.mxu0 0.0
    %535 = vmatpush1.msra.mxu0 0.0
    %536 = vmatprep.subr.mxu0 0.0
    %537 = vmatpush1.msra.mxu0 0.0
    %538 = vmatprep.subr.mxu0 0.0
    %539 = vmatpush1.msra.mxu0 0.0
    %540 = vmatprep.subr.mxu0 0.0
    %541 = vmatpush1.msra.mxu0 0.0
    %542 = vmatprep.subr.mxu0 0.0
    %543 = vmatpush1.msra.mxu0 0.0
    %544 = vmatprep.subr.mxu0 0.0
    %545 = vmatpush1.msra.mxu0 0.0
    %546 = vmatprep.subr.mxu0 0.0
    %547 = vmatpush1.msra.mxu0 0.0
    %548 = vmatprep.subr.mxu0 0.0
    %549 = vmatpush1.msra.mxu0 0.0
    %550 = vmatprep.subr.mxu0 0.0
    %551 = vmatpush1.msra.mxu0 0.0
    %552 = vmatprep.subr.mxu0 0.0
    %553 = vmatpush1.msra.mxu0 0.0
    %554 = vmatprep.subr.mxu0 0.0
    %555 = vmatpush1.msra.mxu0 0.0
    %556 = vmatprep.subr.mxu0 0.0
    %557 = vmatpush1.msra.mxu0 0.0
    %558 = vmatprep.subr.mxu0 0.0
    %559 = vmatpush1.msra.mxu0 0.0
    %560 = vmatprep.subr.mxu0 0.0
    %561 = vmatpush1.msra.mxu0 0.0
    %562 = vmatprep.subr.mxu0 0.0
    %563 = vmatpush1.msra.mxu0 0.0
    %564 = vmatprep.subr.mxu0 0.0
    %565 = vmatpush1.msra.mxu0 0.0
    %566 = vmatprep.subr.mxu0 0.0
    %567 = vmatpush1.msra.mxu0 0.0
    %568 = vmatprep.subr.mxu0 0.0
    %569 = vmatpush1.msra.mxu0 0.0
    %570 = vmatprep.mubr.f32.mxu0 0.0
    %571 = vmatmul.mubr.f32.gmra.mrb[0].mxu0 %v501
    %v572 = vpop.f32.mrb[0].mxu0
    %v573 = vadd.f32 0.0, %v572
    %v574 = vpop.f32.mrb[0].mxu0
    %575 = vmatprep.mubr.f32.mxu0 0.0
    %576 = vmatmul.mubr.f32.gmra.mrb[0].mxu0 %v504
    %v577 = vpop.f32.mrb[0].mxu0
    %v578 = vadd.f32 0.0, %v577
    %v579 = vpop.f32.mrb[0].mxu0
    %580 = vdwg.mxu0
    %v581 = vld [vmem:[%s13] sm:$0xff]
    %v582 = vld [vmem:[%s13 + $0x8] sm:$0xff]
    %v583 = vld [vmem:[%s13 + $0x10] sm:$0xff]
    %v584 = vld [vmem:[%s13 + $0x18] sm:$0xff]
    %v585 = vld [vmem:[#allocation7] sm:$0x1]
    %v586 = vld [vmem:[%s17] sm:$0xff]
    %v587 = vld [vmem:[%s17 + $0x8] sm:$0xff]
    %v588 = vld [vmem:[%s17 + $0x10] sm:$0xff]
    %v589 = vld [vmem:[%s17 + $0x18] sm:$0xff]
    %v590 = vld [vmem:[#allocation9] sm:$0x1]
    %v591 = vld [vmem:[#allocation10] sm:$0x1]
    %v592 = vld [vmem:[#allocation12] sm:$0x1]
    %v594 = vlaneseq
    %v595 = vshrl.u32 %v594, 7
    %v596 = vsub.s32 0, %v595
    %v597 = vrot.slane %v585, %v596
    %vm599 = vcmask 261120
    %v601 = vsel %vm599, %v573, 0
    %v604 = vsel %vm599, %v578, 0
    %606 = vmatprep.subr.mxu0 0.0
    %607 = vmatpush1.msra.mxu0 %v581
    %608 = vmatprep.subr.mxu0 0.0
    %609 = vmatpush1.msra.mxu0 %v582
    %610 = vmatprep.subr.mxu0 0.0
    %611 = vmatpush1.msra.mxu0 %v583
    %612 = vmatprep.subr.mxu0 0.0
    %613 = vmatpush1.msra.mxu0 %v584
    %614 = vmatprep.subr.mxu0 0.0
    %615 = vmatpush1.msra.mxu0 0.0
    %616 = vmatprep.subr.mxu0 0.0
    %617 = vmatpush1.msra.mxu0 0.0
    %618 = vmatprep.subr.mxu0 0.0
    %619 = vmatpush1.msra.mxu0 0.0
    %620 = vmatprep.subr.mxu0 0.0
    %621 = vmatpush1.msra.mxu0 0.0
    %622 = vmatprep.subr.mxu0 0.0
    %623 = vmatpush1.msra.mxu0 0.0
    %624 = vmatprep.subr.mxu0 0.0
    %625 = vmatpush1.msra.mxu0 0.0
    %626 = vmatprep.subr.mxu0 0.0
    %627 = vmatpush1.msra.mxu0 0.0
    %628 = vmatprep.subr.mxu0 0.0
    %629 = vmatpush1.msra.mxu0 0.0
    %630 = vmatprep.subr.mxu0 0.0
    %631 = vmatpush1.msra.mxu0 0.0
    %632 = vmatprep.subr.mxu0 0.0
    %633 = vmatpush1.msra.mxu0 0.0
    %634 = vmatprep.subr.mxu0 0.0
    %635 = vmatpush1.msra.mxu0 0.0
    %636 = vmatprep.subr.mxu0 0.0
    %637 = vmatpush1.msra.mxu0 0.0
    %638 = vmatprep.subr.mxu0 0.0
    %639 = vmatpush1.msra.mxu0 0.0
    %640 = vmatprep.subr.mxu0 0.0
    %641 = vmatpush1.msra.mxu0 0.0
    %642 = vmatprep.subr.mxu0 0.0
    %643 = vmatpush1.msra.mxu0 0.0
    %644 = vmatprep.subr.mxu0 0.0
    %645 = vmatpush1.msra.mxu0 0.0
    %646 = vmatprep.subr.mxu0 0.0
    %647 = vmatpush1.msra.mxu0 0.0
    %648 = vmatprep.subr.mxu0 0.0
    %649 = vmatpush1.msra.mxu0 0.0
    %650 = vmatprep.subr.mxu0 0.0
    %651 = vmatpush1.msra.mxu0 0.0
    %652 = vmatprep.subr.mxu0 0.0
    %653 = vmatpush1.msra.mxu0 0.0
    %654 = vmatprep.subr.mxu0 0.0
    %655 = vmatpush1.msra.mxu0 0.0
    %656 = vmatprep.subr.mxu0 0.0
    %657 = vmatpush1.msra.mxu0 0.0
    %658 = vmatprep.subr.mxu0 0.0
    %659 = vmatpush1.msra.mxu0 0.0
    %660 = vmatprep.subr.mxu0 0.0
    %661 = vmatpush1.msra.mxu0 0.0
    %662 = vmatprep.subr.mxu0 0.0
    %663 = vmatpush1.msra.mxu0 0.0
    %664 = vmatprep.subr.mxu0 0.0
    %665 = vmatpush1.msra.mxu0 0.0
    %666 = vmatprep.subr.mxu0 0.0
    %667 = vmatpush1.msra.mxu0 0.0
    %668 = vmatprep.subr.mxu0 0.0
    %669 = vmatpush1.msra.mxu0 0.0
    %670 = vmatprep.mubr.f32.mxu0 0.0
    %671 = vmatmul.mubr.f32.gmra.mrb[0].mxu0 %v601
    %v672 = vpop.f32.mrb[0].mxu0
    %v673 = vadd.f32 %v597, %v672
    %v674 = vpop.f32.mrb[0].mxu0
    %675 = vmatprep.mubr.f32.mxu0 0.0
    %676 = vmatmul.mubr.f32.gmra.mrb[0].mxu0 %v604
    %v677 = vpop.f32.mrb[0].mxu0
    %v678 = vadd.f32 %v597, %v677
    %v679 = vpop.f32.mrb[0].mxu0
    %680 = vdwg.mxu0
    %v681 = vsel %vm599, %v673, 0.0
    %v682 = vsel %vm599, %v678, 0.0
    %v683 = vadd.f32 %v681, %v682
    %v684 = vrot.slane %v683, 4
    %v685 = vadd.f32 %v683, %v684
    %v686 = vrot.slane %v685, 2
    %v687 = vadd.f32 %v685, %v686
    %v688 = vrot.slane %v687, 1
    %v689 = vadd.f32 %v687, %v688
    %v690 = vmul.f32 %v689, 0.0625
    %v691 = vmul.f32 %v673, %v673
    %v692 = vmul.f32 %v678, %v678
    %v693 = vsel %vm599, %v691, 0.0
    %v694 = vsel %vm599, %v692, 0.0
    %v695 = vadd.f32 %v693, %v694
    %v696 = vrot.slane %v695, 4
    %v697 = vadd.f32 %v695, %v696
    %v698 = vrot.slane %v697, 2
    %v699 = vadd.f32 %v697, %v698
    %v700 = vrot.slane %v699, 1
    %v701 = vadd.f32 %v699, %v700
    %v702 = vmul.f32 %v701, 0.0625
    %v703 = vmul.f32 %v690, %v690
    %v704 = vsub.f32 %v702, %v703
    %v705 = vsub.f32 %v673, %v690
    %v706 = vsub.f32 %v678, %v690
    %v707 = vadd.f32 %v704, 1e-05
    %v708 = vrsqrt.pop %v707
    %v709 = vmul.f32 %v705, %v708
    %v710 = vmul.f32 %v706, %v708
    %v712 = vlaneseq
    %v713 = vshrl.u32 %v712, 7
    %v714 = vsub.s32 0, %v713
    %v715 = vrot.slane %v591, %v714
    %v717 = vmul.f32 %v709, %v715
    %v718 = vmul.f32 %v710, %v715
    %v720 = vlaneseq
    %v721 = vshrl.u32 %v720, 7
    %v722 = vsub.s32 0, %v721
    %v723 = vrot.slane %v592, %v722
    %v725 = vadd.f32 %v717, %v723
    %v726 = vadd.f32 %v718, %v723
    %v727 = vmax.f32 %v725, 0.0
    %v728 = vmax.f32 %v726, 0.0
    %v730 = vlaneseq
    %v731 = vshrl.u32 %v730, 7
    %v732 = vsub.s32 0, %v731
    %v733 = vrot.slane %v590, %v732
    %v736 = vsel %vm599, %v727, 0
    %v739 = vsel %vm599, %v728, 0
    %741 = vmatprep.subr.mxu0 0.0
    %742 = vmatpush1.msra.mxu0 %v586
    %743 = vmatprep.subr.mxu0 0.0
    %744 = vmatpush1.msra.mxu0 %v587
    %745 = vmatprep.subr.mxu0 0.0
    %746 = vmatpush1.msra.mxu0 %v588
    %747 = vmatprep.subr.mxu0 0.0
    %748 = vmatpush1.msra.mxu0 %v589
    %749 = vmatprep.subr.mxu0 0.0
    %750 = vmatpush1.msra.mxu0 0.0
    %751 = vmatprep.subr.mxu0 0.0
    %752 = vmatpush1.msra.mxu0 0.0
    %753 = vmatprep.subr.mxu0 0.0
    %754 = vmatpush1.msra.mxu0 0.0
    %755 = vmatprep.subr.mxu0 0.0
    %756 = vmatpush1.msra.mxu0 0.0
    %757 = vmatprep.subr.mxu0 0.0
    %758 = vmatpush1.msra.mxu0 0.0
    %759 = vmatprep.subr.mxu0 0.0
    %760 = vmatpush1.msra.mxu0 0.0
    %761 = vmatprep.subr.mxu0 0.0
    %762 = vmatpush1.msra.mxu0 0.0
    %763 = vmatprep.subr.mxu0 0.0
    %764 = vmatpush1.msra.mxu0 0.0
    %765 = vmatprep.subr.mxu0 0.0
    %766 = vmatpush1.msra.mxu0 0.0
    %767 = vmatprep.subr.mxu0 0.0
    %768 = vmatpush1.msra.mxu0 0.0
    %769 = vmatprep.subr.mxu0 0.0
    %770 = vmatpush1.msra.mxu0 0.0
    %771 = vmatprep.subr.mxu0 0.0
    %772 = vmatpush1.msra.mxu0 0.0
    %773 = vmatprep.subr.mxu0 0.0
    %774 = vmatpush1.msra.mxu0 0.0
    %775 = vmatprep.subr.mxu0 0.0
    %776 = vmatpush1.msra.mxu0 0.0
    %777 = vmatprep.subr.mxu0 0.0
    %778 = vmatpush1.msra.mxu0 0.0
    %779 = vmatprep.subr.mxu0 0.0
    %780 = vmatpush1.msra.mxu0 0.0
    %781 = vmatprep.subr.mxu0 0.0
    %782 = vmatpush1.msra.mxu0 0.0
    %783 = vmatprep.subr.mxu0 0.0
    %784 = vmatpush1.msra.mxu0 0.0
    %785 = vmatprep.subr.mxu0 0.0
    %786 = vmatpush1.msra.mxu0 0.0
    %787 = vmatprep.subr.mxu0 0.0
    %788 = vmatpush1.msra.mxu0 0.0
    %789 = vmatprep.subr.mxu0 0.0
    %790 = vmatpush1.msra.mxu0 0.0
    %791 = vmatprep.subr.mxu0 0.0
    %792 = vmatpush1.msra.mxu0 0.0
    %793 = vmatprep.subr.mxu0 0.0
    %794 = vmatpush1.msra.mxu0 0.0
    %795 = vmatprep.subr.mxu0 0.0
    %796 = vmatpush1.msra.mxu0 0.0
    %797 = vmatprep.subr.mxu0 0.0
    %798 = vmatpush1.msra.mxu0 0.0
    %799 = vmatprep.subr.mxu0 0.0
    %800 = vmatpush1.msra.mxu0 0.0
    %801 = vmatprep.subr.mxu0 0.0
    %802 = vmatpush1.msra.mxu0 0.0
    %803 = vmatprep.subr.mxu0 0.0
    %804 = vmatpush1.msra.mxu0 0.0
    %805 = vmatprep.mubr.f32.mxu0 0.0
    %806 = vmatmul.mubr.f32.gmra.mrb[0].mxu0 %v736
    %v807 = vpop.f32.mrb[0].mxu0
    %v808 = vadd.f32 %v733, %v807
    %v809 = vpop.f32.mrb[0].mxu0
    %810 = vmatprep.mubr.f32.mxu0 0.0
    %811 = vmatmul.mubr.f32.gmra.mrb[0].mxu0 %v739
    %v812 = vpop.f32.mrb[0].mxu0
    %v813 = vadd.f32 %v733, %v812
    %v814 = vpop.f32.mrb[0].mxu0
    %815 = vdwg.mxu0
    %v816 = vld [vmem:[#allocation13] sm:$0x1]
    %v817 = vld [vmem:[#allocation15] sm:$0x1]
    %v818 = vsel %vm599, %v808, 0.0
    %v819 = vsel %vm599, %v813, 0.0
    %v820 = vadd.f32 %v818, %v819
    %v821 = vrot.slane %v820, 4
    %v822 = vadd.f32 %v820, %v821
    %v823 = vrot.slane %v822, 2
    %v824 = vadd.f32 %v822, %v823
    %v825 = vrot.slane %v824, 1
    %v826 = vadd.f32 %v824, %v825
    %v827 = vmul.f32 %v826, 0.0625
    %v828 = vmul.f32 %v808, %v808
    %v829 = vmul.f32 %v813, %v813
    %v830 = vsel %vm599, %v828, 0.0
    %v831 = vsel %vm599, %v829, 0.0
    %v832 = vadd.f32 %v830, %v831
    %v833 = vrot.slane %v832, 4
    %v834 = vadd.f32 %v832, %v833
    %v835 = vrot.slane %v834, 2
    %v836 = vadd.f32 %v834, %v835
    %v837 = vrot.slane %v836, 1
    %v838 = vadd.f32 %v836, %v837
    %v839 = vmul.f32 %v838, 0.0625
    %v840 = vmul.f32 %v827, %v827
    %v841 = vsub.f32 %v839, %v840
    %v842 = vsub.f32 %v808, %v827
    %v843 = vsub.f32 %v813, %v827
    %v844 = vadd.f32 %v841, 1e-05
    %v845 = vrsqrt.pop %v844
    %v846 = vmul.f32 %v842, %v845
    %v847 = vmul.f32 %v843, %v845
    %v849 = vlaneseq
    %v850 = vshrl.u32 %v849, 7
    %v851 = vsub.s32 0, %v850
    %v852 = vrot.slane %v816, %v851
    %v854 = vmul.f32 %v846, %v852
    %v855 = vmul.f32 %v847, %v852
    %v857 = vlaneseq
    %v858 = vshrl.u32 %v857, 7
    %v859 = vsub.s32 0, %v858
    %v860 = vrot.slane %v817, %v859
    %v862 = vadd.f32 %v854, %v860
    %v863 = vadd.f32 %v855, %v860
    %v864 = vmax.f32 %v862, 0.0
    %v865 = vmax.f32 %v863, 0.0
    %v866 = vld [vmem:[#allocation16] sm:$0x1]
    %v867 = vld [vmem:[#allocation18] sm:$0x1]
    %v868 = vsel %vm599, %v864, 0.0
    %v869 = vsel %vm599, %v865, 0.0
    %v870 = vadd.f32 %v868, %v869
    %v871 = vrot.slane %v870, 4
    %v872 = vadd.f32 %v870, %v871
    %v873 = vrot.slane %v872, 2
    %v874 = vadd.f32 %v872, %v873
    %v875 = vrot.slane %v874, 1
    %v876 = vadd.f32 %v874, %v875
    %v877 = vmul.f32 %v876, 0.0625
    %v878 = vmul.f32 %v864, %v864
    %v879 = vmul.f32 %v865, %v865
    %v880 = vsel %vm599, %v878, 0.0
    %v881 = vsel %vm599, %v879, 0.0
    %v882 = vadd.f32 %v880, %v881
    %v883 = vrot.slane %v882, 4
    %v884 = vadd.f32 %v882, %v883
    %v885 = vrot.slane %v884, 2
    %v886 = vadd.f32 %v884, %v885
    %v887 = vrot.slane %v886, 1
    %v888 = vadd.f32 %v886, %v887
    %v889 = vmul.f32 %v888, 0.0625
    %v890 = vmul.f32 %v877, %v877
    %v891 = vsub.f32 %v889, %v890
    %v892 = vsub.f32 %v864, %v877
    %v893 = vsub.f32 %v865, %v877
    %v894 = vadd.f32 %v891, 1e-05
    %v895 = vrsqrt.pop %v894
    %v896 = vmul.f32 %v892, %v895
    %v897 = vmul.f32 %v893, %v895
    %v899 = vlaneseq
    %v900 = vshrl.u32 %v899, 7
    %v901 = vsub.s32 0, %v900
    %v902 = vrot.slane %v866, %v901
    %v904 = vmul.f32 %v896, %v902
    %v905 = vmul.f32 %v897, %v902
    %v907 = vlaneseq
    %v908 = vshrl.u32 %v907, 7
    %v909 = vsub.s32 0, %v908
    %v910 = vrot.slane %v867, %v909
    %v912 = vadd.f32 %v904, %v910
    %v913 = vadd.f32 %v905, %v910
    %v914 = vmax.f32 %v912, 0.0
    %v915 = vmax.f32 %v913, 0.0
    %916 = vmatprep.subr.mxu0 0.0
    %917 = vmatpush1.msra.mxu0 %v914
    %918 = vmatprep.subr.mxu0 0.0
    %919 = vmatpush1.msra.mxu0 %v915
    %920 = vmatprep.subr.mxu0 0.0
    %921 = vmatpush1.msra.mxu0 0.0
    %922 = vmatprep.subr.mxu0 0.0
    %923 = vmatpush1.msra.mxu0 0.0
    %924 = vmatprep.subr.mxu0 0.0
    %925 = vmatpush1.msra.mxu0 0.0
    %926 = vmatprep.subr.mxu0 0.0
    %927 = vmatpush1.msra.mxu0 0.0
    %928 = vmatprep.subr.mxu0 0.0
    %929 = vmatpush1.msra.mxu0 0.0
    %930 = vmatprep.subr.mxu0 0.0
    %931 = vmatpush1.msra.mxu0 0.0
    %932 = vmatprep.subr.mxu0 0.0
    %933 = vmatpush1.msra.mxu0 0.0
    %934 = vmatprep.subr.mxu0 0.0
    %935 = vmatpush1.msra.mxu0 0.0
    %936 = vmatprep.subr.mxu0 0.0
    %937 = vmatpush1.msra.mxu0 0.0
    %938 = vmatprep.subr.mxu0 0.0
    %939 = vmatpush1.msra.mxu0 0.0
    %940 = vmatprep.subr.mxu0 0.0
    %941 = vmatpush1.msra.mxu0 0.0
    %942 = vmatprep.subr.mxu0 0.0
    %943 = vmatpush1.msra.mxu0 0.0
    %944 = vmatprep.subr.mxu0 0.0
    %945 = vmatpush1.msra.mxu0 0.0
    %946 = vmatprep.subr.mxu0 0.0
    %947 = vmatpush1.msra.mxu0 0.0
    %948 = vmatprep.subr.mxu0 0.0
    %949 = vmatpush1.msra.mxu0 0.0
    %950 = vmatprep.subr.mxu0 0.0
    %951 = vmatpush1.msra.mxu0 0.0
    %952 = vmatprep.subr.mxu0 0.0
    %953 = vmatpush1.msra.mxu0 0.0
    %954 = vmatprep.subr.mxu0 0.0
    %955 = vmatpush1.msra.mxu0 0.0
    %956 = vmatprep.subr.mxu0 0.0
    %957 = vmatpush1.msra.mxu0 0.0
    %958 = vmatprep.subr.mxu0 0.0
    %959 = vmatpush1.msra.mxu0 0.0
    %960 = vmatprep.subr.mxu0 0.0
    %961 = vmatpush1.msra.mxu0 0.0
    %962 = vmatprep.subr.mxu0 0.0
    %963 = vmatpush1.msra.mxu0 0.0
    %964 = vmatprep.subr.mxu0 0.0
    %965 = vmatpush1.msra.mxu0 0.0
    %966 = vmatprep.subr.mxu0 0.0
    %967 = vmatpush1.msra.mxu0 0.0
    %968 = vmatprep.subr.mxu0 0.0
    %969 = vmatpush1.msra.mxu0 0.0
    %970 = vmatprep.subr.mxu0 0.0
    %971 = vmatpush1.msra.mxu0 0.0
    %972 = vmatprep.subr.mxu0 0.0
    %973 = vmatpush1.msra.mxu0 0.0
    %974 = vmatprep.subr.mxu0 0.0
    %975 = vmatpush1.msra.mxu0 0.0
    %976 = vmatprep.subr.mxu0 0.0
    %977 = vmatpush1.msra.mxu0 0.0
    %978 = vmatprep.subr.mxu0 0.0
    %979 = vmatpush1.msra.mxu0 0.0
    %980 = vmatprep.mubr.f32.mxu0 0.0
    %981 = vmatmul.mubr.f32.gmra.mrb[0].mxu0 %v501
    %v982 = vpop.f32.mrb[0].mxu0
    %v983 = vadd.f32 0.0, %v982
    %v984 = vpop.f32.mrb[0].mxu0
    %985 = vmatprep.mubr.f32.mxu0 0.0
    %986 = vmatmul.mubr.f32.gmra.mrb[0].mxu0 %v504
    %v987 = vpop.f32.mrb[0].mxu0
    %v988 = vadd.f32 0.0, %v987
    %v989 = vpop.f32.mrb[0].mxu0
    %990 = vdwg.mxu0
    %v991 = vld [vmem:[%s33] sm:$0xff]
    %v992 = vld [vmem:[%s33 + $0x8] sm:$0xff]
    %v993 = vld [vmem:[%s33 + $0x10] sm:$0xff]
    %v994 = vld [vmem:[%s33 + $0x18] sm:$0xff]
    %v995 = vld [vmem:[#allocation19] sm:$0x1]
    %v996 = vld [vmem:[%s37] sm:$0xff]
    %v997 = vld [vmem:[%s37 + $0x8] sm:$0xff]
    %v998 = vld [vmem:[%s37 + $0x10] sm:$0xff]
    %v999 = vld [vmem:[%s37 + $0x18] sm:$0xff]
    %v1000 = vld [vmem:[%s39] sm:$0x1]
    %v1001 = vld [vmem:[#allocation21] sm:$0x1]
    %v1002 = vld [vmem:[#allocation22] sm:$0x1]
    %v1004 = vlaneseq
    %v1005 = vshrl.u32 %v1004, 7
    %v1006 = vsub.s32 0, %v1005
    %v1007 = vrot.slane %v995, %v1006
    %v1010 = vsel %vm599, %v983, 0
    %v1013 = vsel %vm599, %v988, 0
    %1015 = vmatprep.subr.mxu0 0.0
    %1016 = vmatpush1.msra.mxu0 %v991
    %1017 = vmatprep.subr.mxu0 0.0
    %1018 = vmatpush1.msra.mxu0 %v992
    %1019 = vmatprep.subr.mxu0 0.0
    %1020 = vmatpush1.msra.mxu0 %v993
    %1021 = vmatprep.subr.mxu0 0.0
    %1022 = vmatpush1.msra.mxu0 %v994
    %1023 = vmatprep.subr.mxu0 0.0
    %1024 = vmatpush1.msra.mxu0 0.0
    %1025 = vmatprep.subr.mxu0 0.0
    %1026 = vmatpush1.msra.mxu0 0.0
    %1027 = vmatprep.subr.mxu0 0.0
    %1028 = vmatpush1.msra.mxu0 0.0
    %1029 = vmatprep.subr.mxu0 0.0
    %1030 = vmatpush1.msra.mxu0 0.0
    %1031 = vmatprep.subr.mxu0 0.0
    %1032 = vmatpush1.msra.mxu0 0.0
    %1033 = vmatprep.subr.mxu0 0.0
    %1034 = vmatpush1.msra.mxu0 0.0
    %1035 = vmatprep.subr.mxu0 0.0
    %1036 = vmatpush1.msra.mxu0 0.0
    %1037 = vmatprep.subr.mxu0 0.0
    %1038 = vmatpush1.msra.mxu0 0.0
    %1039 = vmatprep.subr.mxu0 0.0
    %1040 = vmatpush1.msra.mxu0 0.0
    %1041 = vmatprep.subr.mxu0 0.0
    %1042 = vmatpush1.msra.mxu0 0.0
    %1043 = vmatprep.subr.mxu0 0.0
    %1044 = vmatpush1.msra.mxu0 0.0
    %1045 = vmatprep.subr.mxu0 0.0
    %1046 = vmatpush1.msra.mxu0 0.0
    %1047 = vmatprep.subr.mxu0 0.0
    %1048 = vmatpush1.msra.mxu0 0.0
    %1049 = vmatprep.subr.mxu0 0.0
    %1050 = vmatpush1.msra.mxu0 0.0
    %1051 = vmatprep.subr.mxu0 0.0
    %1052 = vmatpush1.msra.mxu0 0.0
    %1053 = vmatprep.subr.mxu0 0.0
    %1054 = vmatpush1.msra.mxu0 0.0
    %1055 = vmatprep.subr.mxu0 0.0
    %1056 = vmatpush1.msra.mxu0 0.0
    %1057 = vmatprep.subr.mxu0 0.0
    %1058 = vmatpush1.msra.mxu0 0.0
    %1059 = vmatprep.subr.mxu0 0.0
    %1060 = vmatpush1.msra.mxu0 0.0
    %1061 = vmatprep.subr.mxu0 0.0
    %1062 = vmatpush1.msra.mxu0 0.0
    %1063 = vmatprep.subr.mxu0 0.0
    %1064 = vmatpush1.msra.mxu0 0.0
    %1065 = vmatprep.subr.mxu0 0.0
    %1066 = vmatpush1.msra.mxu0 0.0
    %1067 = vmatprep.subr.mxu0 0.0
    %1068 = vmatpush1.msra.mxu0 0.0
    %1069 = vmatprep.subr.mxu0 0.0
    %1070 = vmatpush1.msra.mxu0 0.0
    %1071 = vmatprep.subr.mxu0 0.0
    %1072 = vmatpush1.msra.mxu0 0.0
    %1073 = vmatprep.subr.mxu0 0.0
    %1074 = vmatpush1.msra.mxu0 0.0
    %1075 = vmatprep.subr.mxu0 0.0
    %1076 = vmatpush1.msra.mxu0 0.0
    %1077 = vmatprep.subr.mxu0 0.0
    %1078 = vmatpush1.msra.mxu0 0.0
    %1079 = vmatprep.mubr.f32.mxu0 0.0
    %1080 = vmatmul.mubr.f32.gmra.mrb[0].mxu0 %v1010
    %v1081 = vpop.f32.mrb[0].mxu0
    %v1082 = vadd.f32 %v1007, %v1081
    %v1083 = vpop.f32.mrb[0].mxu0
    %1084 = vmatprep.mubr.f32.mxu0 0.0
    %1085 = vmatmul.mubr.f32.gmra.mrb[0].mxu0 %v1013
    %v1086 = vpop.f32.mrb[0].mxu0
    %v1087 = vadd.f32 %v1007, %v1086
    %v1088 = vpop.f32.mrb[0].mxu0
    %1089 = vdwg.mxu0
    %v1090 = vsel %vm599, %v1082, 0.0
    %v1091 = vsel %vm599, %v1087, 0.0
    %v1092 = vadd.f32 %v1090, %v1091
    %v1093 = vrot.slane %v1092, 4
    %v1094 = vadd.f32 %v1092, %v1093
    %v1095 = vrot.slane %v1094, 2
    %v1096 = vadd.f32 %v1094, %v1095
    %v1097 = vrot.slane %v1096, 1
    %v1098 = vadd.f32 %v1096, %v1097
    %v1099 = vmul.f32 %v1098, 0.0625
    %v1100 = vmul.f32 %v1082, %v1082
    %v1101 = vmul.f32 %v1087, %v1087
    %v1102 = vsel %vm599, %v1100, 0.0
    %v1103 = vsel %vm599, %v1101, 0.0
    %v1104 = vadd.f32 %v1102, %v1103
    %v1105 = vrot.slane %v1104, 4
    %v1106 = vadd.f32 %v1104, %v1105
    %v1107 = vrot.slane %v1106, 2
    %v1108 = vadd.f32 %v1106, %v1107
    %v1109 = vrot.slane %v1108, 1
    %v1110 = vadd.f32 %v1108, %v1109
    %v1111 = vmul.f32 %v1110, 0.0625
    %v1112 = vmul.f32 %v1099, %v1099
    %v1113 = vsub.f32 %v1111, %v1112
    %v1114 = vsub.f32 %v1082, %v1099
    %v1115 = vsub.f32 %v1087, %v1099
    %v1116 = vadd.f32 %v1113, 1e-05
    %v1117 = vrsqrt.pop %v1116
    %v1118 = vmul.f32 %v1114, %v1117
    %v1119 = vmul.f32 %v1115, %v1117
    %v1121 = vlaneseq
    %v1122 = vshrl.u32 %v1121, 7
    %v1123 = vsub.s32 0, %v1122
    %v1124 = vrot.slane %v1001, %v1123
    %v1126 = vmul.f32 %v1118, %v1124
    %v1127 = vmul.f32 %v1119, %v1124
    %v1129 = vlaneseq
    %v1130 = vshrl.u32 %v1129, 7
    %v1131 = vsub.s32 0, %v1130
    %v1132 = vrot.slane %v1002, %v1131
    %v1134 = vadd.f32 %v1126, %v1132
    %v1135 = vadd.f32 %v1127, %v1132
    %v1136 = vmax.f32 %v1134, 0.0
    %v1137 = vmax.f32 %v1135, 0.0
    %v1139 = vlaneseq
    %v1140 = vshrl.u32 %v1139, 7
    %v1141 = vsub.s32 0, %v1140
    %v1142 = vrot.slane %v1000, %v1141
    %v1145 = vsel %vm599, %v1136, 0
    %v1148 = vsel %vm599, %v1137, 0
    %1150 = vmatprep.subr.mxu0 0.0
    %1151 = vmatpush1.msra.mxu0 %v996
    %1152 = vmatprep.subr.mxu0 0.0
    %1153 = vmatpush1.msra.mxu0 %v997
    %1154 = vmatprep.subr.mxu0 0.0
    %1155 = vmatpush1.msra.mxu0 %v998
    %1156 = vmatprep.subr.mxu0 0.0
    %1157 = vmatpush1.msra.mxu0 %v999
    %1158 = vmatprep.subr.mxu0 0.0
    %1159 = vmatpush1.msra.mxu0 0.0
    %1160 = vmatprep.subr.mxu0 0.0
    %1161 = vmatpush1.msra.mxu0 0.0
    %1162 = vmatprep.subr.mxu0 0.0
    %1163 = vmatpush1.msra.mxu0 0.0
    %1164 = vmatprep.subr.mxu0 0.0
    %1165 = vmatpush1.msra.mxu0 0.0
    %1166 = vmatprep.subr.mxu0 0.0
    %1167 = vmatpush1.msra.mxu0 0.0
    %1168 = vmatprep.subr.mxu0 0.0
    %1169 = vmatpush1.msra.mxu0 0.0
    %1170 = vmatprep.subr.mxu0 0.0
    %1171 = vmatpush1.msra.mxu0 0.0
    %1172 = vmatprep.subr.mxu0 0.0
    %1173 = vmatpush1.msra.mxu0 0.0
    %1174 = vmatprep.subr.mxu0 0.0
    %1175 = vmatpush1.msra.mxu0 0.0
    %1176 = vmatprep.subr.mxu0 0.0
    %1177 = vmatpush1.msra.mxu0 0.0
    %1178 = vmatprep.subr.mxu0 0.0
    %1179 = vmatpush1.msra.mxu0 0.0
    %1180 = vmatprep.subr.mxu0 0.0
    %1181 = vmatpush1.msra.mxu0 0.0
    %1182 = vmatprep.subr.mxu0 0.0
    %1183 = vmatpush1.msra.mxu0 0.0
    %1184 = vmatprep.subr.mxu0 0.0
    %1185 = vmatpush1.msra.mxu0 0.0
    %1186 = vmatprep.subr.mxu0 0.0
    %1187 = vmatpush1.msra.mxu0 0.0
    %1188 = vmatprep.subr.mxu0 0.0
    %1189 = vmatpush1.msra.mxu0 0.0
    %1190 = vmatprep.subr.mxu0 0.0
    %1191 = vmatpush1.msra.mxu0 0.0
    %1192 = vmatprep.subr.mxu0 0.0
    %1193 = vmatpush1.msra.mxu0 0.0
    %1194 = vmatprep.subr.mxu0 0.0
    %1195 = vmatpush1.msra.mxu0 0.0
    %1196 = vmatprep.subr.mxu0 0.0
    %1197 = vmatpush1.msra.mxu0 0.0
    %1198 = vmatprep.subr.mxu0 0.0
    %1199 = vmatpush1.msra.mxu0 0.0
    %1200 = vmatprep.subr.mxu0 0.0
    %1201 = vmatpush1.msra.mxu0 0.0
    %1202 = vmatprep.subr.mxu0 0.0
    %1203 = vmatpush1.msra.mxu0 0.0
    %1204 = vmatprep.subr.mxu0 0.0
    %1205 = vmatpush1.msra.mxu0 0.0
    %1206 = vmatprep.subr.mxu0 0.0
    %1207 = vmatpush1.msra.mxu0 0.0
    %1208 = vmatprep.subr.mxu0 0.0
    %1209 = vmatpush1.msra.mxu0 0.0
    %1210 = vmatprep.subr.mxu0 0.0
    %1211 = vmatpush1.msra.mxu0 0.0
    %1212 = vmatprep.subr.mxu0 0.0
    %1213 = vmatpush1.msra.mxu0 0.0
    %1214 = vmatprep.mubr.f32.mxu0 0.0
    %1215 = vmatmul.mubr.f32.gmra.mrb[0].mxu0 %v1145
    %v1216 = vpop.f32.mrb[0].mxu0
    %v1217 = vadd.f32 %v1142, %v1216
    %v1218 = vpop.f32.mrb[0].mxu0
    %1219 = vmatprep.mubr.f32.mxu0 0.0
    %1220 = vmatmul.mubr.f32.gmra.mrb[0].mxu0 %v1148
    %v1221 = vpop.f32.mrb[0].mxu0
    %v1222 = vadd.f32 %v1142, %v1221
    %v1223 = vpop.f32.mrb[0].mxu0
    %1224 = vdwg.mxu0
    %v1225 = vld [vmem:[#allocation24] sm:$0x1]
    %v1226 = vld [vmem:[#allocation25] sm:$0x1]
    %v1227 = vsel %vm599, %v1217, 0.0
    %v1228 = vsel %vm599, %v1222, 0.0
    %v1229 = vadd.f32 %v1227, %v1228
    %v1230 = vrot.slane %v1229, 4
    %v1231 = vadd.f32 %v1229, %v1230
    %v1232 = vrot.slane %v1231, 2
    %v1233 = vadd.f32 %v1231, %v1232
    %v1234 = vrot.slane %v1233, 1
    %v1235 = vadd.f32 %v1233, %v1234
    %v1236 = vmul.f32 %v1235, 0.0625
    %v1237 = vmul.f32 %v1217, %v1217
    %v1238 = vmul.f32 %v1222, %v1222
    %v1239 = vsel %vm599, %v1237, 0.0
    %v1240 = vsel %vm599, %v1238, 0.0
    %v1241 = vadd.f32 %v1239, %v1240
    %v1242 = vrot.slane %v1241, 4
    %v1243 = vadd.f32 %v1241, %v1242
    %v1244 = vrot.slane %v1243, 2
    %v1245 = vadd.f32 %v1243, %v1244
    %v1246 = vrot.slane %v1245, 1
    %v1247 = vadd.f32 %v1245, %v1246
    %v1248 = vmul.f32 %v1247, 0.0625
    %v1249 = vmul.f32 %v1236, %v1236
    %v1250 = vsub.f32 %v1248, %v1249
    %v1251 = vsub.f32 %v1217, %v1236
    %v1252 = vsub.f32 %v1222, %v1236
    %v1253 = vadd.f32 %v1250, 1e-05
    %v1254 = vrsqrt.pop %v1253
    %v1255 = vmul.f32 %v1251, %v1254
    %v1256 = vmul.f32 %v1252, %v1254
    %v1258 = vlaneseq
    %v1259 = vshrl.u32 %v1258, 7
    %v1260 = vsub.s32 0, %v1259
    %v1261 = vrot.slane %v1225, %v1260
    %v1263 = vmul.f32 %v1255, %v1261
    %v1264 = vmul.f32 %v1256, %v1261
    %v1266 = vlaneseq
    %v1267 = vshrl.u32 %v1266, 7
    %v1268 = vsub.s32 0, %v1267
    %v1269 = vrot.slane %v1226, %v1268
    %v1271 = vadd.f32 %v1263, %v1269
    %v1272 = vadd.f32 %v1264, %v1269
    %v1273 = vmax.f32 %v1271, 0.0
    %v1274 = vmax.f32 %v1272, 0.0
    %v1275 = vld [vmem:[#allocation27] sm:$0x1]
    %v1276 = vld [vmem:[#allocation28] sm:$0x1]
    %v1277 = vsel %vm599, %v1273, 0.0
    %v1278 = vsel %vm599, %v1274, 0.0
    %v1279 = vadd.f32 %v1277, %v1278
    %v1280 = vrot.slane %v1279, 4
    %v1281 = vadd.f32 %v1279, %v1280
    %v1282 = vrot.slane %v1281, 2
    %v1283 = vadd.f32 %v1281, %v1282
    %v1284 = vrot.slane %v1283, 1
    %v1285 = vadd.f32 %v1283, %v1284
    %v1286 = vmul.f32 %v1285, 0.0625
    %v1287 = vmul.f32 %v1273, %v1273
    %v1288 = vmul.f32 %v1274, %v1274
    %v1289 = vsel %vm599, %v1287, 0.0
    %v1290 = vsel %vm599, %v1288, 0.0
    %v1291 = vadd.f32 %v1289, %v1290
    %v1292 = vrot.slane %v1291, 4
    %v1293 = vadd.f32 %v1291, %v1292
    %v1294 = vrot.slane %v1293, 2
    %v1295 = vadd.f32 %v1293, %v1294
    %v1296 = vrot.slane %v1295, 1
    %v1297 = vadd.f32 %v1295, %v1296
    %v1298 = vmul.f32 %v1297, 0.0625
    %v1299 = vmul.f32 %v1286, %v1286
    %v1300 = vsub.f32 %v1298, %v1299
    %v1301 = vsub.f32 %v1273, %v1286
    %v1302 = vsub.f32 %v1274, %v1286
    %v1303 = vadd.f32 %v1300, 1e-05
    %v1304 = vrsqrt.pop %v1303
    %v1305 = vmul.f32 %v1301, %v1304
    %v1306 = vmul.f32 %v1302, %v1304
    %v1308 = vlaneseq
    %v1309 = vshrl.u32 %v1308, 7
    %v1310 = vsub.s32 0, %v1309
    %v1311 = vrot.slane %v1275, %v1310
    %v1313 = vmul.f32 %v1305, %v1311
    %v1314 = vmul.f32 %v1306, %v1311
    %v1316 = vlaneseq
    %v1317 = vshrl.u32 %v1316, 7
    %v1318 = vsub.s32 0, %v1317
    %v1319 = vrot.slane %v1276, %v1318
    %v1321 = vadd.f32 %v1313, %v1319
    %v1322 = vadd.f32 %v1314, %v1319
    %v1323 = vmax.f32 %v1321, 0.0
    %v1324 = vmax.f32 %v1322, 0.0
    %v1325 = vld [vmem:[%s53] sm:$0xff]
    %v1326 = vld [vmem:[%s53 + $0x8] sm:$0xff]
    %v1327 = vld [vmem:[%s53 + $0x10] sm:$0xff]
    %v1328 = vld [vmem:[%s53 + $0x18] sm:$0xff]
    %v1329 = vld [vmem:[#allocation30] sm:$0x1]
    %v1331 = vlaneseq
    %v1332 = vshrl.u32 %v1331, 7
    %v1333 = vsub.s32 0, %v1332
    %v1334 = vrot.slane %v1329, %v1333
    %v1337 = vsel %vm599, %v491, 0
    %v1340 = vsel %vm599, %v496, 0
    %1342 = vmatprep.subr.mxu0 0.0
    %1343 = vmatpush1.msra.mxu0 %v1325
    %1344 = vmatprep.subr.mxu0 0.0
    %1345 = vmatpush1.msra.mxu0 %v1326
    %1346 = vmatprep.subr.mxu0 0.0
    %1347 = vmatpush1.msra.mxu0 %v1327
    %1348 = vmatprep.subr.mxu0 0.0
    %1349 = vmatpush1.msra.mxu0 %v1328
    %1350 = vmatprep.subr.mxu0 0.0
    %1351 = vmatpush1.msra.mxu0 0.0
    %1352 = vmatprep.subr.mxu0 0.0
    %1353 = vmatpush1.msra.mxu0 0.0
    %1354 = vmatprep.subr.mxu0 0.0
    %1355 = vmatpush1.msra.mxu0 0.0
    %1356 = vmatprep.subr.mxu0 0.0
    %1357 = vmatpush1.msra.mxu0 0.0
    %1358 = vmatprep.subr.mxu0 0.0
    %1359 = vmatpush1.msra.mxu0 0.0
    %1360 = vmatprep.subr.mxu0 0.0
    %1361 = vmatpush1.msra.mxu0 0.0
    %1362 = vmatprep.subr.mxu0 0.0
    %1363 = vmatpush1.msra.mxu0 0.0
    %1364 = vmatprep.subr.mxu0 0.0
    %1365 = vmatpush1.msra.mxu0 0.0
    %1366 = vmatprep.subr.mxu0 0.0
    %1367 = vmatpush1.msra.mxu0 0.0
    %1368 = vmatprep.subr.mxu0 0.0
    %1369 = vmatpush1.msra.mxu0 0.0
    %1370 = vmatprep.subr.mxu0 0.0
    %1371 = vmatpush1.msra.mxu0 0.0
    %1372 = vmatprep.subr.mxu0 0.0
    %1373 = vmatpush1.msra.mxu0 0.0
    %1374 = vmatprep.subr.mxu0 0.0
    %1375 = vmatpush1.msra.mxu0 0.0
    %1376 = vmatprep.subr.mxu0 0.0
    %1377 = vmatpush1.msra.mxu0 0.0
    %1378 = vmatprep.subr.mxu0 0.0
    %1379 = vmatpush1.msra.mxu0 0.0
    %1380 = vmatprep.subr.mxu0 0.0
    %1381 = vmatpush1.msra.mxu0 0.0
    %1382 = vmatprep.subr.mxu0 0.0
    %1383 = vmatpush1.msra.mxu0 0.0
    %1384 = vmatprep.subr.mxu0 0.0
    %1385 = vmatpush1.msra.mxu0 0.0
    %1386 = vmatprep.subr.mxu0 0.0
    %1387 = vmatpush1.msra.mxu0 0.0
    %1388 = vmatprep.subr.mxu0 0.0
    %1389 = vmatpush1.msra.mxu0 0.0
    %1390 = vmatprep.subr.mxu0 0.0
    %1391 = vmatpush1.msra.mxu0 0.0
    %1392 = vmatprep.subr.mxu0 0.0
    %1393 = vmatpush1.msra.mxu0 0.0
    %1394 = vmatprep.subr.mxu0 0.0
    %1395 = vmatpush1.msra.mxu0 0.0
    %1396 = vmatprep.subr.mxu0 0.0
    %1397 = vmatpush1.msra.mxu0 0.0
    %1398 = vmatprep.subr.mxu0 0.0
    %1399 = vmatpush1.msra.mxu0 0.0
    %1400 = vmatprep.subr.mxu0 0.0
    %1401 = vmatpush1.msra.mxu0 0.0
    %1402 = vmatprep.subr.mxu0 0.0
    %1403 = vmatpush1.msra.mxu0 0.0
    %1404 = vmatprep.subr.mxu0 0.0
    %1405 = vmatpush1.msra.mxu0 0.0
    %1406 = vmatprep.mubr.f32.mxu0 0.0
    %1407 = vmatmul.mubr.f32.gmra.mrb[0].mxu0 %v1337
    %v1408 = vpop.f32.mrb[0].mxu0
    %v1409 = vadd.f32 %v1334, %v1408
    %v1410 = vpop.f32.mrb[0].mxu0
    %1411 = vmatprep.mubr.f32.mxu0 0.0
    %1412 = vmatmul.mubr.f32.gmra.mrb[0].mxu0 %v1340
    %v1413 = vpop.f32.mrb[0].mxu0
    %v1414 = vadd.f32 %v1334, %v1413
    %v1415 = vpop.f32.mrb[0].mxu0
    %1416 = vdwg.mxu0
    %v1417 = vld [vmem:[%s57] sm:$0xff]
    %v1418 = vld [vmem:[%s57 + $0x8] sm:$0xff]
    %v1419 = vld [vmem:[%s57 + $0x10] sm:$0xff]
    %v1420 = vld [vmem:[%s57 + $0x18] sm:$0xff]
    %v1421 = vld [vmem:[%s59] sm:$0x1]
    %v1423 = vlaneseq
    %v1424 = vshrl.u32 %v1423, 7
    %v1425 = vsub.s32 0, %v1424
    %v1426 = vrot.slane %v1421, %v1425
    %v1429 = vsel %vm599, %v914, 0
    %v1432 = vsel %vm599, %v915, 0
    %1434 = vmatprep.subr.mxu0 0.0
    %1435 = vmatpush1.msra.mxu0 %v1417
    %1436 = vmatprep.subr.mxu0 0.0
    %1437 = vmatpush1.msra.mxu0 %v1418
    %1438 = vmatprep.subr.mxu0 0.0
    %1439 = vmatpush1.msra.mxu0 %v1419
    %1440 = vmatprep.subr.mxu0 0.0
    %1441 = vmatpush1.msra.mxu0 %v1420
    %1442 = vmatprep.subr.mxu0 0.0
    %1443 = vmatpush1.msra.mxu0 0.0
    %1444 = vmatprep.subr.mxu0 0.0
    %1445 = vmatpush1.msra.mxu0 0.0
    %1446 = vmatprep.subr.mxu0 0.0
    %1447 = vmatpush1.msra.mxu0 0.0
    %1448 = vmatprep.subr.mxu0 0.0
    %1449 = vmatpush1.msra.mxu0 0.0
    %1450 = vmatprep.subr.mxu0 0.0
    %1451 = vmatpush1.msra.mxu0 0.0
    %1452 = vmatprep.subr.mxu0 0.0
    %1453 = vmatpush1.msra.mxu0 0.0
    %1454 = vmatprep.subr.mxu0 0.0
    %1455 = vmatpush1.msra.mxu0 0.0
    %1456 = vmatprep.subr.mxu0 0.0
    %1457 = vmatpush1.msra.mxu0 0.0
    %1458 = vmatprep.subr.mxu0 0.0
    %1459 = vmatpush1.msra.mxu0 0.0
    %1460 = vmatprep.subr.mxu0 0.0
    %1461 = vmatpush1.msra.mxu0 0.0
    %1462 = vmatprep.subr.mxu0 0.0
    %1463 = vmatpush1.msra.mxu0 0.0
    %1464 = vmatprep.subr.mxu0 0.0
    %1465 = vmatpush1.msra.mxu0 0.0
    %1466 = vmatprep.subr.mxu0 0.0
    %1467 = vmatpush1.msra.mxu0 0.0
    %1468 = vmatprep.subr.mxu0 0.0
    %1469 = vmatpush1.msra.mxu0 0.0
    %1470 = vmatprep.subr.mxu0 0.0
    %1471 = vmatpush1.msra.mxu0 0.0
    %1472 = vmatprep.subr.mxu0 0.0
    %1473 = vmatpush1.msra.mxu0 0.0
    %1474 = vmatprep.subr.mxu0 0.0
    %1475 = vmatpush1.msra.mxu0 0.0
    %1476 = vmatprep.subr.mxu0 0.0
    %1477 = vmatpush1.msra.mxu0 0.0
    %1478 = vmatprep.subr.mxu0 0.0
    %1479 = vmatpush1.msra.mxu0 0.0
    %1480 = vmatprep.subr.mxu0 0.0
    %1481 = vmatpush1.msra.mxu0 0.0
    %1482 = vmatprep.subr.mxu0 0.0
    %1483 = vmatpush1.msra.mxu0 0.0
    %1484 = vmatprep.subr.mxu0 0.0
    %1485 = vmatpush1.msra.mxu0 0.0
    %1486 = vmatprep.subr.mxu0 0.0
    %1487 = vmatpush1.msra.mxu0 0.0
    %1488 = vmatprep.subr.mxu0 0.0
    %1489 = vmatpush1.msra.mxu0 0.0
    %1490 = vmatprep.subr.mxu0 0.0
    %1491 = vmatpush1.msra.mxu0 0.0
    %1492 = vmatprep.subr.mxu0 0.0
    %1493 = vmatpush1.msra.mxu0 0.0
    %1494 = vmatprep.subr.mxu0 0.0
    %1495 = vmatpush1.msra.mxu0 0.0
    %1496 = vmatprep.subr.mxu0 0.0
    %1497 = vmatpush1.msra.mxu0 0.0
    %1498 = vmatprep.mubr.f32.mxu0 0.0
    %1499 = vmatmul.mubr.f32.gmra.mrb[0].mxu0 %v1429
    %v1500 = vpop.f32.mrb[0].mxu0
    %v1501 = vadd.f32 %v1426, %v1500
    %v1502 = vpop.f32.mrb[0].mxu0
    %1503 = vmatprep.mubr.f32.mxu0 0.0
    %1504 = vmatmul.mubr.f32.gmra.mrb[0].mxu0 %v1432
    %v1505 = vpop.f32.mrb[0].mxu0
    %v1506 = vadd.f32 %v1426, %v1505
    %v1507 = vpop.f32.mrb[0].mxu0
    %1508 = vdwg.mxu0
    %v1509 = vadd.f32 %v1409, %v1501
    %v1510 = vadd.f32 %v1414, %v1506
    %v1511 = vld [vmem:[%s61] sm:$0xff]
    %v1512 = vld [vmem:[%s61 + $0x8] sm:$0xff]
    %v1513 = vld [vmem:[%s61 + $0x10] sm:$0xff]
    %v1514 = vld [vmem:[%s61 + $0x18] sm:$0xff]
    %v1515 = vld [vmem:[%s63] sm:$0x1]
    %v1517 = vlaneseq
    %v1518 = vshrl.u32 %v1517, 7
    %v1519 = vsub.s32 0, %v1518
    %v1520 = vrot.slane %v1515, %v1519
    %v1523 = vsel %vm599, %v1323, 0
    %v1526 = vsel %vm599, %v1324, 0
    %1528 = vmatprep.subr.mxu0 0.0
    %1529 = vmatpush1.msra.mxu0 %v1511
    %1530 = vmatprep.subr.mxu0 0.0
    %1531 = vmatpush1.msra.mxu0 %v1512
    %1532 = vmatprep.subr.mxu0 0.0
    %1533 = vmatpush1.msra.mxu0 %v1513
    %1534 = vmatprep.subr.mxu0 0.0
    %1535 = vmatpush1.msra.mxu0 %v1514
    %1536 = vmatprep.subr.mxu0 0.0
    %1537 = vmatpush1.msra.mxu0 0.0
    %1538 = vmatprep.subr.mxu0 0.0
    %1539 = vmatpush1.msra.mxu0 0.0
    %1540 = vmatprep.subr.mxu0 0.0
    %1541 = vmatpush1.msra.mxu0 0.0
    %1542 = vmatprep.subr.mxu0 0.0
    %1543 = vmatpush1.msra.mxu0 0.0
    %1544 = vmatprep.subr.mxu0 0.0
    %1545 = vmatpush1.msra.mxu0 0.0
    %1546 = vmatprep.subr.mxu0 0.0
    %1547 = vmatpush1.msra.mxu0 0.0
    %1548 = vmatprep.subr.mxu0 0.0
    %1549 = vmatpush1.msra.mxu0 0.0
    %1550 = vmatprep.subr.mxu0 0.0
    %1551 = vmatpush1.msra.mxu0 0.0
    %1552 = vmatprep.subr.mxu0 0.0
    %1553 = vmatpush1.msra.mxu0 0.0
    %1554 = vmatprep.subr.mxu0 0.0
    %1555 = vmatpush1.msra.mxu0 0.0
    %1556 = vmatprep.subr.mxu0 0.0
    %1557 = vmatpush1.msra.mxu0 0.0
    %1558 = vmatprep.subr.mxu0 0.0
    %1559 = vmatpush1.msra.mxu0 0.0
    %1560 = vmatprep.subr.mxu0 0.0
    %1561 = vmatpush1.msra.mxu0 0.0
    %1562 = vmatprep.subr.mxu0 0.0
    %1563 = vmatpush1.msra.mxu0 0.0
    %1564 = vmatprep.subr.mxu0 0.0
    %1565 = vmatpush1.msra.mxu0 0.0
    %1566 = vmatprep.subr.mxu0 0.0
    %1567 = vmatpush1.msra.mxu0 0.0
    %1568 = vmatprep.subr.mxu0 0.0
    %1569 = vmatpush1.msra.mxu0 0.0
    %1570 = vmatprep.subr.mxu0 0.0
    %1571 = vmatpush1.msra.mxu0 0.0
    %1572 = vmatprep.subr.mxu0 0.0
    %1573 = vmatpush1.msra.mxu0 0.0
    %1574 = vmatprep.subr.mxu0 0.0
    %1575 = vmatpush1.msra.mxu0 0.0
    %1576 = vmatprep.subr.mxu0 0.0
    %1577 = vmatpush1.msra.mxu0 0.0
    %1578 = vmatprep.subr.mxu0 0.0
    %1579 = vmatpush1.msra.mxu0 0.0
    %1580 = vmatprep.subr.mxu0 0.0
    %1581 = vmatpush1.msra.mxu0 0.0
    %1582 = vmatprep.subr.mxu0 0.0
    %1583 = vmatpush1.msra.mxu0 0.0
    %1584 = vmatprep.subr.mxu0 0.0
    %1585 = vmatpush1.msra.mxu0 0.0
    %1586 = vmatprep.subr.mxu0 0.0
    %1587 = vmatpush1.msra.mxu0 0.0
    %1588 = vmatprep.subr.mxu0 0.0
    %1589 = vmatpush1.msra.mxu0 0.0
    %1590 = vmatprep.subr.mxu0 0.0
    %1591 = vmatpush1.msra.mxu0 0.0
    %1592 = vmatprep.mubr.f32.mxu0 0.0
    %1593 = vmatmul.mubr.f32.gmra.mrb[0].mxu0 %v1523
    %v1594 = vpop.f32.mrb[0].mxu0
    %v1595 = vadd.f32 %v1520, %v1594
    %v1596 = vpop.f32.mrb[0].mxu0
    %1597 = vmatprep.mubr.f32.mxu0 0.0
    %1598 = vmatmul.mubr.f32.gmra.mrb[0].mxu0 %v1526
    %v1599 = vpop.f32.mrb[0].mxu0
    %v1600 = vadd.f32 %v1520, %v1599
    %v1601 = vpop.f32.mrb[0].mxu0
    %1602 = vdwg.mxu0
    %v1603 = vadd.f32 %v1509, %v1595
    %v1604 = vadd.f32 %v1510, %v1600
    %v1605 = vld [vmem:[%s65] sm:$0xff]
    %v1606 = vld [vmem:[%s65 + $0x8] sm:$0xff]
    %v1607 = vld [vmem:[%s65 + $0x10] sm:$0xff]
    %v1608 = vld [vmem:[%s65 + $0x18] sm:$0xff]
    %v1609 = vld [vmem:[#allocation31] sm:$0xff]
    %v1610 = vld [vmem:[#allocation31 + $0x8] sm:$0xff]
    %v1611 = vld [vmem:[#allocation31 + $0x10] sm:$0xff]
    %v1612 = vld [vmem:[#allocation31 + $0x18] sm:$0xff]
    %v1613 = vld [vmem:[%s69] sm:$0x1]
    %v1615 = vsel %vm599, %v1603, 0
    %v1618 = vsel %vm599, %v1604, 0
    %1620 = vmatprep.subr.mxu0 0.0
    %1621 = vmatpush1.msra.mxu0 %v1605
    %1622 = vmatprep.subr.mxu0 0.0
    %1623 = vmatpush1.msra.mxu0 %v1606
    %1624 = vmatprep.subr.mxu0 0.0
    %1625 = vmatpush1.msra.mxu0 %v1607
    %1626 = vmatprep.subr.mxu0 0.0
    %1627 = vmatpush1.msra.mxu0 %v1608
    %1628 = vmatprep.subr.mxu0 0.0
    %1629 = vmatpush1.msra.mxu0 0.0
    %1630 = vmatprep.subr.mxu0 0.0
    %1631 = vmatpush1.msra.mxu0 0.0
    %1632 = vmatprep.subr.mxu0 0.0
    %1633 = vmatpush1.msra.mxu0 0.0
    %1634 = vmatprep.subr.mxu0 0.0
    %1635 = vmatpush1.msra.mxu0 0.0
    %1636 = vmatprep.subr.mxu0 0.0
    %1637 = vmatpush1.msra.mxu0 0.0
    %1638 = vmatprep.subr.mxu0 0.0
    %1639 = vmatpush1.msra.mxu0 0.0
    %1640 = vmatprep.subr.mxu0 0.0
    %1641 = vmatpush1.msra.mxu0 0.0
    %1642 = vmatprep.subr.mxu0 0.0
    %1643 = vmatpush1.msra.mxu0 0.0
    %1644 = vmatprep.subr.mxu0 0.0
    %1645 = vmatpush1.msra.mxu0 0.0
    %1646 = vmatprep.subr.mxu0 0.0
    %1647 = vmatpush1.msra.mxu0 0.0
    %1648 = vmatprep.subr.mxu0 0.0
    %1649 = vmatpush1.msra.mxu0 0.0
    %1650 = vmatprep.subr.mxu0 0.0
    %1651 = vmatpush1.msra.mxu0 0.0
    %1652 = vmatprep.subr.mxu0 0.0
    %1653 = vmatpush1.msra.mxu0 0.0
    %1654 = vmatprep.subr.mxu0 0.0
    %1655 = vmatpush1.msra.mxu0 0.0
    %1656 = vmatprep.subr.mxu0 0.0
    %1657 = vmatpush1.msra.mxu0 0.0
    %1658 = vmatprep.subr.mxu0 0.0
    %1659 = vmatpush1.msra.mxu0 0.0
    %1660 = vmatprep.subr.mxu0 0.0
    %1661 = vmatpush1.msra.mxu0 0.0
    %1662 = vmatprep.subr.mxu0 0.0
    %1663 = vmatpush1.msra.mxu0 0.0
    %1664 = vmatprep.subr.mxu0 0.0
    %1665 = vmatpush1.msra.mxu0 0.0
    %1666 = vmatprep.subr.mxu0 0.0
    %1667 = vmatpush1.msra.mxu0 0.0
    %1668 = vmatprep.subr.mxu0 0.0
    %1669 = vmatpush1.msra.mxu0 0.0
    %1670 = vmatprep.subr.mxu0 0.0
    %1671 = vmatpush1.msra.mxu0 0.0
    %1672 = vmatprep.subr.mxu0 0.0
    %1673 = vmatpush1.msra.mxu0 0.0
    %1674 = vmatprep.subr.mxu0 0.0
    %1675 = vmatpush1.msra.mxu0 0.0
    %1676 = vmatprep.subr.mxu0 0.0
    %1677 = vmatpush1.msra.mxu0 0.0
    %1678 = vmatprep.subr.mxu0 0.0
    %1679 = vmatpush1.msra.mxu0 0.0
    %1680 = vmatprep.subr.mxu0 0.0
    %1681 = vmatpush1.msra.mxu0 0.0
    %1682 = vmatprep.subr.mxu0 0.0
    %1683 = vmatpush1.msra.mxu0 0.0
    %1684 = vmatprep.mubr.f32.mxu0 0.0
    %1685 = vmatmul.mubr.f32.gmra.mrb[0].mxu0 %v1615
    %v1686 = vpop.f32.mrb[0].mxu0
    %v1687 = vadd.f32 0.0, %v1686
    %v1688 = vpop.f32.mrb[0].mxu0
    %1689 = vmatprep.mubr.f32.mxu0 0.0
    %1690 = vmatmul.mubr.f32.gmra.mrb[0].mxu0 %v1618
    %v1691 = vpop.f32.mrb[0].mxu0
    %v1692 = vadd.f32 0.0, %v1691
    %v1693 = vpop.f32.mrb[0].mxu0
    %1694 = vdwg.mxu0
    %1695 = vmatprep.subr.mxu0 0.0
    %1696 = vmatpush1.msra.mxu0 %v1609
    %1697 = vmatprep.subr.mxu0 0.0
    %1698 = vmatpush1.msra.mxu0 %v1610
    %1699 = vmatprep.subr.mxu0 0.0
    %1700 = vmatpush1.msra.mxu0 %v1611
    %1701 = vmatprep.subr.mxu0 0.0
    %1702 = vmatpush1.msra.mxu0 %v1612
    %1703 = vmatprep.subr.mxu0 0.0
    %1704 = vmatpush1.msra.mxu0 0.0
    %1705 = vmatprep.subr.mxu0 0.0
    %1706 = vmatpush1.msra.mxu0 0.0
    %1707 = vmatprep.subr.mxu0 0.0
    %1708 = vmatpush1.msra.mxu0 0.0
    %1709 = vmatprep.subr.mxu0 0.0
    %1710 = vmatpush1.msra.mxu0 0.0
    %1711 = vmatprep.subr.mxu0 0.0
    %1712 = vmatpush1.msra.mxu0 0.0
    %1713 = vmatprep.subr.mxu0 0.0
    %1714 = vmatpush1.msra.mxu0 0.0
    %1715 = vmatprep.subr.mxu0 0.0
    %1716 = vmatpush1.msra.mxu0 0.0
    %1717 = vmatprep.subr.mxu0 0.0
    %1718 = vmatpush1.msra.mxu0 0.0
    %1719 = vmatprep.subr.mxu0 0.0
    %1720 = vmatpush1.msra.mxu0 0.0
    %1721 = vmatprep.subr.mxu0 0.0
    %1722 = vmatpush1.msra.mxu0 0.0
    %1723 = vmatprep.subr.mxu0 0.0
    %1724 = vmatpush1.msra.mxu0 0.0
    %1725 = vmatprep.subr.mxu0 0.0
    %1726 = vmatpush1.msra.mxu0 0.0
    %1727 = vmatprep.subr.mxu0 0.0
    %1728 = vmatpush1.msra.mxu0 0.0
    %1729 = vmatprep.subr.mxu0 0.0
    %1730 = vmatpush1.msra.mxu0 0.0
    %1731 = vmatprep.subr.mxu0 0.0
    %1732 = vmatpush1.msra.mxu0 0.0
    %1733 = vmatprep.subr.mxu0 0.0
    %1734 = vmatpush1.msra.mxu0 0.0
    %1735 = vmatprep.subr.mxu0 0.0
    %1736 = vmatpush1.msra.mxu0 0.0
    %1737 = vmatprep.subr.mxu0 0.0
    %1738 = vmatpush1.msra.mxu0 0.0
    %1739 = vmatprep.subr.mxu0 0.0
    %1740 = vmatpush1.msra.mxu0 0.0
    %1741 = vmatprep.subr.mxu0 0.0
    %1742 = vmatpush1.msra.mxu0 0.0
    %1743 = vmatprep.subr.mxu0 0.0
    %1744 = vmatpush1.msra.mxu0 0.0
    %1745 = vmatprep.subr.mxu0 0.0
    %1746 = vmatpush1.msra.mxu0 0.0
    %1747 = vmatprep.subr.mxu0 0.0
    %1748 = vmatpush1.msra.mxu0 0.0
    %1749 = vmatprep.subr.mxu0 0.0
    %1750 = vmatpush1.msra.mxu0 0.0
    %1751 = vmatprep.subr.mxu0 0.0
    %1752 = vmatpush1.msra.mxu0 0.0
    %1753 = vmatprep.subr.mxu0 0.0
    %1754 = vmatpush1.msra.mxu0 0.0
    %1755 = vmatprep.subr.mxu0 0.0
    %1756 = vmatpush1.msra.mxu0 0.0
    %1757 = vmatprep.subr.mxu0 0.0
    %1758 = vmatpush1.msra.mxu0 0.0
    %1759 = vmatprep.mubr.f32.mxu0 0.0
    %1760 = vmatmul.mubr.f32.gmra.mrb[0].mxu0 %v1615
    %v1761 = vpop.f32.mrb[0].mxu0
    %v1762 = vadd.f32 0.0, %v1761
    %v1763 = vpop.f32.mrb[0].mxu0
    %1764 = vmatprep.mubr.f32.mxu0 0.0
    %1765 = vmatmul.mubr.f32.gmra.mrb[0].mxu0 %v1618
    %v1766 = vpop.f32.mrb[0].mxu0
    %v1767 = vadd.f32 0.0, %v1766
    %v1768 = vpop.f32.mrb[0].mxu0
    %1769 = vdwg.mxu0
    %v1771 = vsel %vm499, %v405, 0
    %v1774 = vsel %vm499, %v406, 0
    %v1777 = vsel %vm499, %v407, 0
    %v1780 = vsel %vm499, %v408, 0
    %1782 = vmatprep.subr.mxu0 0.0
    %1783 = vmatpush1.msra.mxu0 %v1762
    %1784 = vmatprep.subr.mxu0 0.0
    %1785 = vmatpush1.msra.mxu0 %v1767
    %1786 = vmatprep.subr.mxu0 0.0
    %1787 = vmatpush1.msra.mxu0 0.0
    %1788 = vmatprep.subr.mxu0 0.0
    %1789 = vmatpush1.msra.mxu0 0.0
    %1790 = vmatprep.subr.mxu0 0.0
    %1791 = vmatpush1.msra.mxu0 0.0
    %1792 = vmatprep.subr.mxu0 0.0
    %1793 = vmatpush1.msra.mxu0 0.0
    %1794 = vmatprep.subr.mxu0 0.0
    %1795 = vmatpush1.msra.mxu0 0.0
    %1796 = vmatprep.subr.mxu0 0.0
    %1797 = vmatpush1.msra.mxu0 0.0
    %1798 = vmatprep.subr.mxu0 0.0
    %1799 = vmatpush1.msra.mxu0 0.0
    %1800 = vmatprep.subr.mxu0 0.0
    %1801 = vmatpush1.msra.mxu0 0.0
    %1802 = vmatprep.subr.mxu0 0.0
    %1803 = vmatpush1.msra.mxu0 0.0
    %1804 = vmatprep.subr.mxu0 0.0
    %1805 = vmatpush1.msra.mxu0 0.0
    %1806 = vmatprep.subr.mxu0 0.0
    %1807 = vmatpush1.msra.mxu0 0.0
    %1808 = vmatprep.subr.mxu0 0.0
    %1809 = vmatpush1.msra.mxu0 0.0
    %1810 = vmatprep.subr.mxu0 0.0
    %1811 = vmatpush1.msra.mxu0 0.0
    %1812 = vmatprep.subr.mxu0 0.0
    %1813 = vmatpush1.msra.mxu0 0.0
    %1814 = vmatprep.subr.mxu0 0.0
    %1815 = vmatpush1.msra.mxu0 0.0
    %1816 = vmatprep.subr.mxu0 0.0
    %1817 = vmatpush1.msra.mxu0 0.0
    %1818 = vmatprep.subr.mxu0 0.0
    %1819 = vmatpush1.msra.mxu0 0.0
    %1820 = vmatprep.subr.mxu0 0.0
    %1821 = vmatpush1.msra.mxu0 0.0
    %1822 = vmatprep.subr.mxu0 0.0
    %1823 = vmatpush1.msra.mxu0 0.0
    %1824 = vmatprep.subr.mxu0 0.0
    %1825 = vmatpush1.msra.mxu0 0.0
    %1826 = vmatprep.subr.mxu0 0.0
    %1827 = vmatpush1.msra.mxu0 0.0
    %1828 = vmatprep.subr.mxu0 0.0
    %1829 = vmatpush1.msra.mxu0 0.0
    %1830 = vmatprep.subr.mxu0 0.0
    %1831 = vmatpush1.msra.mxu0 0.0
    %1832 = vmatprep.subr.mxu0 0.0
    %1833 = vmatpush1.msra.mxu0 0.0
    %1834 = vmatprep.subr.mxu0 0.0
    %1835 = vmatpush1.msra.mxu0 0.0
    %1836 = vmatprep.subr.mxu0 0.0
    %1837 = vmatpush1.msra.mxu0 0.0
    %1838 = vmatprep.subr.mxu0 0.0
    %1839 = vmatpush1.msra.mxu0 0.0
    %1840 = vmatprep.subr.mxu0 0.0
    %1841 = vmatpush1.msra.mxu0 0.0
    %1842 = vmatprep.subr.mxu0 0.0
    %1843 = vmatpush1.msra.mxu0 0.0
    %1844 = vmatprep.subr.mxu0 0.0
    %1845 = vmatpush1.msra.mxu0 0.0
    %1846 = vmatprep.mubr.f32.mxu0 0.0
    %1847 = vmatmul.mubr.f32.gmra.mrb[0].mxu0 %v1771
    %v1848 = vpop.f32.mrb[0].mxu0
    %v1849 = vadd.f32 0.0, %v1848
    %v1850 = vpop.f32.mrb[0].mxu0
    %1851 = vmatprep.mubr.f32.mxu0 0.0
    %1852 = vmatmul.mubr.f32.gmra.mrb[0].mxu0 %v1774
    %v1853 = vpop.f32.mrb[0].mxu0
    %v1854 = vadd.f32 0.0, %v1853
    %v1855 = vpop.f32.mrb[0].mxu0
    %1856 = vmatprep.mubr.f32.mxu0 0.0
    %1857 = vmatmul.mubr.f32.gmra.mrb[0].mxu0 %v1777
    %v1858 = vpop.f32.mrb[0].mxu0
    %v1859 = vadd.f32 0.0, %v1858
    %v1860 = vpop.f32.mrb[0].mxu0
    %1861 = vmatprep.mubr.f32.mxu0 0.0
    %1862 = vmatmul.mubr.f32.gmra.mrb[0].mxu0 %v1780
    %v1863 = vpop.f32.mrb[0].mxu0
    %v1864 = vadd.f32 0.0, %v1863
    %v1865 = vpop.f32.mrb[0].mxu0
    %1866 = vdwg.mxu0
    %v1868 = vsel %vm499, %v401, 0
    %v1871 = vsel %vm499, %v402, 0
    %v1874 = vsel %vm499, %v403, 0
    %v1877 = vsel %vm499, %v404, 0
    %1879 = vmatprep.subr.mxu0 0.0
    %1880 = vmatpush1.msra.mxu0 %v1687
    %1881 = vmatprep.subr.mxu0 0.0
    %1882 = vmatpush1.msra.mxu0 %v1692
    %1883 = vmatprep.subr.mxu0 0.0
    %1884 = vmatpush1.msra.mxu0 0.0
    %1885 = vmatprep.subr.mxu0 0.0
    %1886 = vmatpush1.msra.mxu0 0.0
    %1887 = vmatprep.subr.mxu0 0.0
    %1888 = vmatpush1.msra.mxu0 0.0
    %1889 = vmatprep.subr.mxu0 0.0
    %1890 = vmatpush1.msra.mxu0 0.0
    %1891 = vmatprep.subr.mxu0 0.0
    %1892 = vmatpush1.msra.mxu0 0.0
    %1893 = vmatprep.subr.mxu0 0.0
    %1894 = vmatpush1.msra.mxu0 0.0
    %1895 = vmatprep.subr.mxu0 0.0
    %1896 = vmatpush1.msra.mxu0 0.0
    %1897 = vmatprep.subr.mxu0 0.0
    %1898 = vmatpush1.msra.mxu0 0.0
    %1899 = vmatprep.subr.mxu0 0.0
    %1900 = vmatpush1.msra.mxu0 0.0
    %1901 = vmatprep.subr.mxu0 0.0
    %1902 = vmatpush1.msra.mxu0 0.0
    %1903 = vmatprep.subr.mxu0 0.0
    %1904 = vmatpush1.msra.mxu0 0.0
    %1905 = vmatprep.subr.mxu0 0.0
    %1906 = vmatpush1.msra.mxu0 0.0
    %1907 = vmatprep.subr.mxu0 0.0
    %1908 = vmatpush1.msra.mxu0 0.0
    %1909 = vmatprep.subr.mxu0 0.0
    %1910 = vmatpush1.msra.mxu0 0.0
    %1911 = vmatprep.subr.mxu0 0.0
    %1912 = vmatpush1.msra.mxu0 0.0
    %1913 = vmatprep.subr.mxu0 0.0
    %1914 = vmatpush1.msra.mxu0 0.0
    %1915 = vmatprep.subr.mxu0 0.0
    %1916 = vmatpush1.msra.mxu0 0.0
    %1917 = vmatprep.subr.mxu0 0.0
    %1918 = vmatpush1.msra.mxu0 0.0
    %1919 = vmatprep.subr.mxu0 0.0
    %1920 = vmatpush1.msra.mxu0 0.0
    %1921 = vmatprep.subr.mxu0 0.0
    %1922 = vmatpush1.msra.mxu0 0.0
    %1923 = vmatprep.subr.mxu0 0.0
    %1924 = vmatpush1.msra.mxu0 0.0
    %1925 = vmatprep.subr.mxu0 0.0
    %1926 = vmatpush1.msra.mxu0 0.0
    %1927 = vmatprep.subr.mxu0 0.0
    %1928 = vmatpush1.msra.mxu0 0.0
    %1929 = vmatprep.subr.mxu0 0.0
    %1930 = vmatpush1.msra.mxu0 0.0
    %1931 = vmatprep.subr.mxu0 0.0
    %1932 = vmatpush1.msra.mxu0 0.0
    %1933 = vmatprep.subr.mxu0 0.0
    %1934 = vmatpush1.msra.mxu0 0.0
    %1935 = vmatprep.subr.mxu0 0.0
    %1936 = vmatpush1.msra.mxu0 0.0
    %1937 = vmatprep.subr.mxu0 0.0
    %1938 = vmatpush1.msra.mxu0 0.0
    %1939 = vmatprep.subr.mxu0 0.0
    %1940 = vmatpush1.msra.mxu0 0.0
    %1941 = vmatprep.subr.mxu0 0.0
    %1942 = vmatpush1.msra.mxu0 0.0
    %1943 = vmatprep.mubr.f32.mxu0 0.0
    %1944 = vmatmul.mubr.f32.gmra.mrb[0].mxu0 %v1868
    %v1945 = vpop.f32.mrb[0].mxu0
    %v1946 = vadd.f32 %v1849, %v1945
    %v1947 = vpop.f32.mrb[0].mxu0
    %1948 = vmatprep.mubr.f32.mxu0 0.0
    %1949 = vmatmul.mubr.f32.gmra.mrb[0].mxu0 %v1871
    %v1950 = vpop.f32.mrb[0].mxu0
    %v1951 = vadd.f32 %v1854, %v1950
    %v1952 = vpop.f32.mrb[0].mxu0
    %1953 = vmatprep.mubr.f32.mxu0 0.0
    %1954 = vmatmul.mubr.f32.gmra.mrb[0].mxu0 %v1874
    %v1955 = vpop.f32.mrb[0].mxu0
    %v1956 = vadd.f32 %v1859, %v1955
    %v1957 = vpop.f32.mrb[0].mxu0
    %1958 = vmatprep.mubr.f32.mxu0 0.0
    %1959 = vmatmul.mubr.f32.gmra.mrb[0].mxu0 %v1877
    %v1960 = vpop.f32.mrb[0].mxu0
    %v1961 = vadd.f32 %v1864, %v1960
    %v1962 = vpop.f32.mrb[0].mxu0
    %1963 = vdwg.mxu0
    %v1965 = vlaneseq
    %v1966 = vshrl.u32 %v1965, 7
    %v1967 = vsub.s32 0, %v1966
    %v1968 = vrot.slane %v1613, %v1967
    %v1970 = vadd.f32 %v1946, %v1968
    %v1971 = vadd.f32 %v1951, %v1968
    %v1972 = vadd.f32 %v1956, %v1968
    %v1973 = vadd.f32 %v1961, %v1968
    %v1974 = vld [vmem:[%s71] sm:$0xff]
    %v1975 = vld [vmem:[%s71 + $0x8] sm:$0xff]
    %v1976 = vld [vmem:[%s71 + $0x10] sm:$0xff]
    %v1977 = vld [vmem:[%s71 + $0x18] sm:$0xff]
    %v1978 = vld [vmem:[%s73] sm:$0x1]
    %v1979 = vld [vmem:[%s75] sm:$0x1]
    %v1980 = vld [vmem:[%s77] sm:$0x1]
    %v1981 = vsel %vm599, %v1970, 0.0
    %v1982 = vsel %vm599, %v1971, 0.0
    %v1983 = vadd.f32 %v1981, %v1982
    %v1984 = vsel %vm599, %v1972, 0.0
    %v1985 = vadd.f32 %v1983, %v1984
    %v1986 = vsel %vm599, %v1973, 0.0
    %v1987 = vadd.f32 %v1985, %v1986
    %v1988 = vrot.slane %v1987, 4
    %v1989 = vadd.f32 %v1987, %v1988
    %v1990 = vrot.slane %v1989, 2
    %v1991 = vadd.f32 %v1989, %v1990
    %v1992 = vrot.slane %v1991, 1
    %v1993 = vadd.f32 %v1991, %v1992
    %v1994 = vmul.f32 %v1993, 0.03125
    %v1995 = vmul.f32 %v1970, %v1970
    %v1996 = vmul.f32 %v1971, %v1971
    %v1997 = vmul.f32 %v1972, %v1972
    %v1998 = vmul.f32 %v1973, %v1973
    %v1999 = vsel %vm599, %v1995, 0.0
    %v2000 = vsel %vm599, %v1996, 0.0
    %v2001 = vadd.f32 %v1999, %v2000
    %v2002 = vsel %vm599, %v1997, 0.0
    %v2003 = vadd.f32 %v2001, %v2002
    %v2004 = vsel %vm599, %v1998, 0.0
    %v2005 = vadd.f32 %v2003, %v2004
    %v2006 = vrot.slane %v2005, 4
    %v2007 = vadd.f32 %v2005, %v2006
    %v2008 = vrot.slane %v2007, 2
    %v2009 = vadd.f32 %v2007, %v2008
    %v2010 = vrot.slane %v2009, 1
    %v2011 = vadd.f32 %v2009, %v2010
    %v2012 = vmul.f32 %v2011, 0.03125
    %v2013 = vmul.f32 %v1994, %v1994
    %v2014 = vsub.f32 %v2012, %v2013
    %v2015 = vsub.f32 %v1970, %v1994
    %v2016 = vsub.f32 %v1971, %v1994
    %v2017 = vsub.f32 %v1972, %v1994
    %v2018 = vsub.f32 %v1973, %v1994
    %v2019 = vadd.f32 %v2014, 1e-05
    %v2020 = vrsqrt.pop %v2019
    %v2021 = vmul.f32 %v2015, %v2020
    %v2022 = vmul.f32 %v2016, %v2020
    %v2023 = vmul.f32 %v2017, %v2020
    %v2024 = vmul.f32 %v2018, %v2020
    %v2026 = vlaneseq
    %v2027 = vshrl.u32 %v2026, 7
    %v2028 = vsub.s32 0, %v2027
    %v2029 = vrot.slane %v1979, %v2028
    %v2031 = vmul.f32 %v2021, %v2029
    %v2032 = vmul.f32 %v2022, %v2029
    %v2033 = vmul.f32 %v2023, %v2029
    %v2034 = vmul.f32 %v2024, %v2029
    %v2036 = vlaneseq
    %v2037 = vshrl.u32 %v2036, 7
    %v2038 = vsub.s32 0, %v2037
    %v2039 = vrot.slane %v1980, %v2038
    %v2041 = vadd.f32 %v2031, %v2039
    %v2042 = vadd.f32 %v2032, %v2039
    %v2043 = vadd.f32 %v2033, %v2039
    %v2044 = vadd.f32 %v2034, %v2039
    %v2045 = vmax.f32 %v2041, 0.0
    %v2046 = vmax.f32 %v2042, 0.0
    %v2047 = vmax.f32 %v2043, 0.0
    %v2048 = vmax.f32 %v2044, 0.0
    %v2050 = vlaneseq
    %v2051 = vshrl.u32 %v2050, 7
    %v2052 = vsub.s32 0, %v2051
    %v2053 = vrot.slane %v1978, %v2052
    %v2056 = vsel %vm599, %v2045, 0
    %v2059 = vsel %vm599, %v2046, 0
    %v2062 = vsel %vm599, %v2047, 0
    %v2065 = vsel %vm599, %v2048, 0
    %2067 = vmatprep.subr.mxu0 0.0
    %2068 = vmatpush1.msra.mxu0 %v1974
    %2069 = vmatprep.subr.mxu0 0.0
    %2070 = vmatpush1.msra.mxu0 %v1975
    %2071 = vmatprep.subr.mxu0 0.0
    %2072 = vmatpush1.msra.mxu0 %v1976
    %2073 = vmatprep.subr.mxu0 0.0
    %2074 = vmatpush1.msra.mxu0 %v1977
    %2075 = vmatprep.subr.mxu0 0.0
    %2076 = vmatpush1.msra.mxu0 0.0
    %2077 = vmatprep.subr.mxu0 0.0
    %2078 = vmatpush1.msra.mxu0 0.0
    %2079 = vmatprep.subr.mxu0 0.0
    %2080 = vmatpush1.msra.mxu0 0.0
    %2081 = vmatprep.subr.mxu0 0.0
    %2082 = vmatpush1.msra.mxu0 0.0
    %2083 = vmatprep.subr.mxu0 0.0
    %2084 = vmatpush1.msra.mxu0 0.0
    %2085 = vmatprep.subr.mxu0 0.0
    %2086 = vmatpush1.msra.mxu0 0.0
    %2087 = vmatprep.subr.mxu0 0.0
    %2088 = vmatpush1.msra.mxu0 0.0
    %2089 = vmatprep.subr.mxu0 0.0
    %2090 = vmatpush1.msra.mxu0 0.0
    %2091 = vmatprep.subr.mxu0 0.0
    %2092 = vmatpush1.msra.mxu0 0.0
    %2093 = vmatprep.subr.mxu0 0.0
    %2094 = vmatpush1.msra.mxu0 0.0
    %2095 = vmatprep.subr.mxu0 0.0
    %2096 = vmatpush1.msra.mxu0 0.0
    %2097 = vmatprep.subr.mxu0 0.0
    %2098 = vmatpush1.msra.mxu0 0.0
    %2099 = vmatprep.subr.mxu0 0.0
    %2100 = vmatpush1.msra.mxu0 0.0
    %2101 = vmatprep.subr.mxu0 0.0
    %2102 = vmatpush1.msra.mxu0 0.0
    %2103 = vmatprep.subr.mxu0 0.0
    %2104 = vmatpush1.msra.mxu0 0.0
    %2105 = vmatprep.subr.mxu0 0.0
    %2106 = vmatpush1.msra.mxu0 0.0
    %2107 = vmatprep.subr.mxu0 0.0
    %2108 = vmatpush1.msra.mxu0 0.0
    %2109 = vmatprep.subr.mxu0 0.0
    %2110 = vmatpush1.msra.mxu0 0.0
    %2111 = vmatprep.subr.mxu0 0.0
    %2112 = vmatpush1.msra.mxu0 0.0
    %2113 = vmatprep.subr.mxu0 0.0
    %2114 = vmatpush1.msra.mxu0 0.0
    %2115 = vmatprep.subr.mxu0 0.0
    %2116 = vmatpush1.msra.mxu0 0.0
    %2117 = vmatprep.subr.mxu0 0.0
    %2118 = vmatpush1.msra.mxu0 0.0
    %2119 = vmatprep.subr.mxu0 0.0
    %2120 = vmatpush1.msra.mxu0 0.0
    %2121 = vmatprep.subr.mxu0 0.0
    %2122 = vmatpush1.msra.mxu0 0.0
    %2123 = vmatprep.subr.mxu0 0.0
    %2124 = vmatpush1.msra.mxu0 0.0
    %2125 = vmatprep.subr.mxu0 0.0
    %2126 = vmatpush1.msra.mxu0 0.0
    %2127 = vmatprep.subr.mxu0 0.0
    %2128 = vmatpush1.msra.mxu0 0.0
    %2129 = vmatprep.subr.mxu0 0.0
    %2130 = vmatpush1.msra.mxu0 0.0
    %2131 = vmatprep.mubr.f32.mxu0 0.0
    %2132 = vmatmul.mubr.f32.gmra.mrb[0].mxu0 %v2056
    %v2133 = vpop.f32.mrb[0].mxu0
    %v2134 = vadd.f32 %v2053, %v2133
    %v2135 = vpop.f32.mrb[0].mxu0
    %2136 = vmatprep.mubr.f32.mxu0 0.0
    %2137 = vmatmul.mubr.f32.gmra.mrb[0].mxu0 %v2059
    %v2138 = vpop.f32.mrb[0].mxu0
    %v2139 = vadd.f32 %v2053, %v2138
    %v2140 = vpop.f32.mrb[0].mxu0
    %2141 = vmatprep.mubr.f32.mxu0 0.0
    %2142 = vmatmul.mubr.f32.gmra.mrb[0].mxu0 %v2062
    %v2143 = vpop.f32.mrb[0].mxu0
    %v2144 = vadd.f32 %v2053, %v2143
    %v2145 = vpop.f32.mrb[0].mxu0
    %2146 = vmatprep.mubr.f32.mxu0 0.0
    %2147 = vmatmul.mubr.f32.gmra.mrb[0].mxu0 %v2065
    %v2148 = vpop.f32.mrb[0].mxu0
    %v2149 = vadd.f32 %v2053, %v2148
    %v2150 = vpop.f32.mrb[0].mxu0
    %2151 = vdwg.mxu0
    %2152 = vst.msk [vmem:[%s79] sm:$0xff] %vm417, %v2134
    %2153 = vst.msk [vmem:[%s79 + $0x8] sm:$0xff] %vm417, %v2139
    %2154 = vst.msk [vmem:[%s79 + $0x10] sm:$0xff] %vm417, %v2144
    %2155 = vst.msk [vmem:[%s79 + $0x18] sm:$0xff] %vm417, %v2149
    // Predicated region
    $region238: #{tpu_custom_call.1} parent=1 // pred_check
      _
    $region239: #{tpu_custom_call.1} parent=1 // pred_check_branch
      %2157 = sbr.rel (0) target = $region241
    $region240: #{tpu_custom_call.1} parent=1 // pred_region
      _
    $region241: #{tpu_custom_call.1} parent=1 // pred_fallthru
      _
    // Predicated region
    $region242: #{tpu_custom_call.1} parent=1 // pred_check
      _
    $region243: #{tpu_custom_call.1} parent=1 // pred_check_branch
      %2159 = sbr.rel (0) target = $region245
    $region244: #{tpu_custom_call.1} parent=1 // pred_region
      _
    $region245: #{tpu_custom_call.1} parent=1 // pred_fallthru
      _
    %2160 = vsyncpa [#allocation3], 1
    %2161 = vsyncpa [#allocation5], 1
    %2162 = vsyncpa [#allocation8], 1
    %2163 = vsyncpa [#allocation11], 1
    %2164 = vsyncpa [#allocation14], 1
    %2165 = vsyncpa [#allocation17], 1
    %2166 = vsyncpa [#allocation20], 1
    %2167 = vsyncpa [#allocation23], 1
    %2168 = vsyncpa [#allocation26], 1
    %2169 = vsyncpa [#allocation29], 1
    %2170 = vsyncpa [#allocation32], 1

</llo_original>
